<compile_context>
chip_gen: v5e
topology: v5e:2x2
jax: 0.10.0
libtpu: 0.0.40
codegen_flags: <defaults>
</compile_context>

<pallas_src>
import jax
import jax.numpy as jnp
from jax.experimental import pallas as pl
from jax.experimental.pallas import tpu as pltpu

LATENT_PAD = 128            # fused mu|logvar head width (one lane-dense vreg row)


def _round_up(n, m):
    return ((n + m - 1) // m) * m


def vae_forward_kernel(x_ref, eps_ref,
                       w1_ref, b1_ref,
                       wh_ref, bh_ref,
                       w3_ref, b3_ref,
                       w4_ref, b4_ref,
                       recon_ref, head_ref):
    zp = head_ref.shape[1]                 # 128 fused-head lanes
    half = zp // 2                         # logvar lane offset

    # ---- encode: fc1 -> ReLU (x cast to bf16 in-kernel) ----
    x = x_ref[...].astype(jnp.bfloat16)                                   # (TB, D)
    h1 = jnp.dot(x, w1_ref[...], preferred_element_type=jnp.float32) + b1_ref[...]
    h1 = jnp.maximum(h1, 0.0).astype(jnp.bfloat16)

    # fused mu|logvar head: one (HID, 128) matmul.
    # lanes [0, Z) = mu, lanes [half, half+Z) = logvar, remaining lanes are zero
    # because the packed weight/bias columns there are zero.
    head = jnp.dot(h1, wh_ref[...], preferred_element_type=jnp.float32) + bh_ref[...]

    # ---- reparameterize (f32) ----
    # std = exp(0.5*logvar); lane-align it onto the mu half with an XLU roll
    # (shift == zp/2, so roll direction is irrelevant -- halves swap).
    std_aligned = pltpu.roll(jnp.exp(0.5 * head), shift=half, axis=1)
    eps = eps_ref[...]                                                    # (TB, Z) f32
    eps_p = jnp.pad(eps, ((0, 0), (0, zp - eps.shape[1])))                # -> (TB, 128)
    # mu lanes:     mu + eps * exp(0.5*logvar)
    # logvar lanes: logvar (eps is zero there; w3 rows there are zero -> harmless)
    z = head + eps_p * std_aligned

    # ---- decode: fc3 -> ReLU -> fc4 -> sigmoid ----
    h3 = jnp.dot(z.astype(jnp.bfloat16), w3_ref[...],
                 preferred_element_type=jnp.float32) + b3_ref[...]
    h3 = jnp.maximum(h3, 0.0).astype(jnp.bfloat16)
    logits = jnp.dot(h3, w4_ref[...], preferred_element_type=jnp.float32) + b4_ref[...]

    # TODO(synk): emitting raw logits (BCE-with-logits downstream) would skip the
    # sigmoid and cut more bytes, but changes the module's output contract.
    recon_ref[...] = jax.nn.sigmoid(logits).astype(recon_ref.dtype)       # bf16 store
    head_ref[...] = head                                                  # fused mu|logvar


def vae_forward(x_nchw, eps, params, tile_b=512):
    """x_nchw: (B, C, H, W) float; eps: (B, Z) float.

    Returns (recon (B, D) bf16, mu (B, Z) f32, logvar (B, Z) f32).
    """
    B = x_nchw.shape[0]
    D = x_nchw.shape[1] * x_nchw.shape[2] * x_nchw.shape[3]
    x = x_nchw.reshape(B, D)               # contiguous -> metadata-only reshape

    (w1, b1, wh, bh, w3, b3, w4, b4) = params
    HID = w1.shape[1]
    ZP = wh.shape[1]                        # fused head width (128)
    half = ZP // 2
    Z = eps.shape[1]

    # Batch tile: multiple of 16 (bf16 packs 2 rows/sublane), large by default to
    # amortize the ~0.35us per-grid-step overhead, but capped so there are >= 2
    # grid steps when the batch allows it (lets v7x shard the parallel batch axis
    # across both TensorCores).
    Bp = _round_up(B, 16)
    TB = max(16, min(_round_up(tile_b, 16), Bp))
    if Bp // TB < 2 and Bp >= 32:
        TB = _round_up(pl.cdiv(Bp, 2), 16)
    Bp = _round_up(B, TB)

    if Bp != B:
        # TODO(synk): the ragged last tile could be handled with in-kernel store
        # masking instead of this wrapper-side pad copy.
        x = jnp.pad(x, ((0, Bp - B), (0, 0)))
        eps = jnp.pad(eps, ((0, Bp - B), (0, 0)))
    eps = eps.astype(jnp.float32)

    grid = (Bp // TB,)
    row = lambda i: (i, 0)      # batch-tiled arrays
    rep = lambda i: (0, 0)      # weights: constant block -> VMEM-resident

    in_specs = [
        pl.BlockSpec((TB, D), row),          # x (cast to bf16 in-kernel)
        pl.BlockSpec((TB, Z), row),          # eps at true width (no lane padding in HBM)
        pl.BlockSpec((D, HID), rep),         # w1  (bf16)
        pl.BlockSpec((1, HID), rep),         # b1
        pl.BlockSpec((HID, ZP), rep),        # fused mu|logvar weight (bf16)
        pl.BlockSpec((1, ZP), rep),          # fused mu|logvar bias
        pl.BlockSpec((ZP, HID), rep),        # w3, rows [Z:ZP) zero (bf16)
        pl.BlockSpec((1, HID), rep),         # b3
        pl.BlockSpec((HID, D), rep),         # w4 (bf16)
        pl.BlockSpec((1, D), rep),           # b4
    ]
    out_specs = (
        pl.BlockSpec((TB, D), row),          # recon (bf16)
        pl.BlockSpec((TB, ZP), row),         # fused mu|logvar head (f32)
    )
    out_shape = (
        jax.ShapeDtypeStruct((Bp, D), jnp.bfloat16),
        jax.ShapeDtypeStruct((Bp, ZP), jnp.float32),
    )

    weight_bytes = sum(int(a.size) * a.dtype.itemsize
                       for a in (w1, b1, wh, bh, w3, b3, w4, b4))
    cost = pl.CostEstimate(
        flops=2 * Bp * (D * HID + HID * ZP + ZP * HID + HID * D),
        transcendentals=Bp * (ZP + D),
        bytes_accessed=(Bp * D * x.dtype.itemsize      # x in
                        + Bp * Z * 4                   # eps in
                        + weight_bytes                 # resident weights
                        + Bp * D * 2                   # recon out (bf16)
                        + Bp * ZP * 4),                # fused head out (f32)
    )

    recon, head = pl.pallas_call(
        vae_forward_kernel,
        out_shape=out_shape,
        grid_spec=pltpu.PrefetchScalarGridSpec(
            num_scalar_prefetch=0,
            grid=grid,
            in_specs=in_specs,
            out_specs=out_specs,
        ),
        compiler_params=pltpu.CompilerParams(
            dimension_semantics=("parallel",)),
        cost_estimate=cost,
    )(x, eps, w1, b1, wh, bh, w3, b3, w4, b4)

    mu = head[:B, :Z]
    logvar = head[:B, half:half + Z]
    return recon[:B], mu, logvar


def init_params(key, d_in, d_hidden, d_latent, d_latent_pad=LATENT_PAD):
    """Weights stored (in, out) in bf16; biases (1, out) in f32.

    Encoder head is fused into one 128-lane slab: columns [0:Z) = mu weights,
    columns [64:64+Z) = logvar weights, all other columns zero.  Decoder input
    weight is row-padded to 128 (rows [Z:128) zero).
    """
    assert d_latent <= d_latent_pad // 2
    ks = jax.random.split(key, 5)
    scale = 0.02
    ZP = d_latent_pad
    half = ZP // 2

    def w(k, fin, fout):
        return scale * jax.random.normal(k, (fin, fout), dtype=jnp.float32)

    w1 = w(ks[0], d_in, d_hidden)
    wmu = w(ks[1], d_hidden, d_latent)
    wlv = w(ks[2], d_hidden, d_latent)
    w3 = w(ks[3], d_latent, d_hidden)
    w4 = w(ks[4], d_hidden, d_in)

    wh = jnp.zeros((d_hidden, ZP), jnp.float32)
    wh = wh.at[:, :d_latent].set(wmu).at[:, half:half + d_latent].set(wlv)
    w3p = jnp.zeros((ZP, d_hidden), jnp.float32).at[:d_latent].set(w3)

    b1 = jnp.zeros((1, d_hidden), jnp.float32)
    bh = jnp.zeros((1, ZP), jnp.float32)
    b3 = jnp.zeros((1, d_hidden), jnp.float32)
    b4 = jnp.zeros((1, d_in), jnp.float32)

    return (w1.astype(jnp.bfloat16), b1,
            wh.astype(jnp.bfloat16), bh,
            w3p.astype(jnp.bfloat16), b3,
            w4.astype(jnp.bfloat16), b4)


def vae_forward_ref(x_nchw, eps, params):
    """Pure-JAX reference mirroring the kernel math (bf16 dots, f32 accumulation)."""
    B = x_nchw.shape[0]
    D = x_nchw.shape[1] * x_nchw.shape[2] * x_nchw.shape[3]
    x = x_nchw.reshape(B, D).astype(jnp.bfloat16)
    (w1, b1, wh, bh, w3, b3, w4, b4) = params
    ZP = wh.shape[1]
    half = ZP // 2
    Z = eps.shape[1]

    h1 = jnp.maximum(jnp.dot(x, w1, preferred_element_type=jnp.float32) + b1, 0.0)
    head = jnp.dot(h1.astype(jnp.bfloat16), wh,
                   preferred_element_type=jnp.float32) + bh
    mu = head[:, :Z]
    logvar = head[:, half:half + Z]
    z = jnp.zeros((B, ZP), jnp.float32)
    z = z.at[:, :Z].set(mu + eps.astype(jnp.float32) * jnp.exp(0.5 * logvar))
    z = z.at[:, half:half + Z].set(logvar)     # mirrors kernel; w3 rows there are zero
    h3 = jnp.maximum(jnp.dot(z.astype(jnp.bfloat16), w3,
                             preferred_element_type=jnp.float32) + b3, 0.0)
    recon = jax.nn.sigmoid(jnp.dot(h3.astype(jnp.bfloat16), w4,
                                   preferred_element_type=jnp.float32) + b4)
    return recon, mu, logvar


if __name__ == "__main__":
    # Small shapes consistent with an NCHW image VAE: batch=32, 1x16x16 images,
    # hidden=256, latent=32 (fused/padded to a 128-lane head inside the pipeline).
    B, C, Himg, Wimg = 32, 1, 16, 16
    D = C * Himg * Wimg          # 256
    HID = 256
    Z = 32

    key = jax.random.PRNGKey(0)
    k_x, k_eps, k_p = jax.random.split(key, 3)

    x = jax.random.uniform(k_x, (B, C, Himg, Wimg), dtype=jnp.float32)
    eps = jax.random.normal(k_eps, (B, Z), dtype=jnp.float32)
    params = init_params(k_p, D, HID, Z)

    # B=32 with the default tile_b triggers the ">= 2 grid steps" cap -> TB=16,
    # grid=(2,), so the batch pipeline (and v7x dual-TC sharding) is exercised
    # even at demo size; realistic batches use 512-row tiles.
    recon, mu, logvar = vae_forward(x, eps, params)
    jax.block_until_ready((recon, mu, logvar))

    # sanity check against pure-JAX reference
    r_ref, mu_ref, lv_ref = vae_forward_ref(x, eps, params)
    assert recon.shape == (B, D) and mu.shape == (B, Z) and logvar.shape == (B, Z)
    assert jnp.allclose(recon.astype(jnp.float32), r_ref.astype(jnp.float32),
                        atol=1e-2, rtol=1e-2)      # recon stored in bf16
    assert jnp.allclose(mu, mu_ref, atol=2e-3, rtol=2e-3)
    assert jnp.allclose(logvar, lv_ref, atol=2e-3, rtol=2e-3)

    print("KERNEL_OK")
</pallas_src>

<mosaic_0001>
module attributes {stable_mosaic.version = 11 : i64} {
  func.func @vae_forward_kernel(%arg0: i32, %arg1: memref<16x256xf32, #tpu.memory_space<vmem>>, %arg2: memref<16x32xf32, #tpu.memory_space<vmem>>, %arg3: memref<256x256xbf16, #tpu.memory_space<vmem>>, %arg4: memref<1x256xf32, #tpu.memory_space<vmem>>, %arg5: memref<256x128xbf16, #tpu.memory_space<vmem>>, %arg6: memref<1x128xf32, #tpu.memory_space<vmem>>, %arg7: memref<128x256xbf16, #tpu.memory_space<vmem>>, %arg8: memref<1x256xf32, #tpu.memory_space<vmem>>, %arg9: memref<256x256xbf16, #tpu.memory_space<vmem>>, %arg10: memref<1x256xf32, #tpu.memory_space<vmem>>, %arg11: memref<16x256xbf16, #tpu.memory_space<vmem>>, %arg12: memref<16x128xf32, #tpu.memory_space<vmem>>) attributes {dimension_semantics = [#tpu.dimension_semantics<parallel>], iteration_bounds = array<i64: 2>, scalar_prefetch = 0 : i64, scratch_operands = 0 : i64, tpu.core_type = #tpu.core_type<tc>, window_params = [{transform_indices = @transform_0, window_bounds = array<i64: 16, 256>}, {transform_indices = @transform_1, window_bounds = array<i64: 16, 32>}, {pipeline_mode = #tpu.pipeline_mode<synchronous>, transform_indices = @transform_2, window_bounds = array<i64: 256, 256>}, {pipeline_mode = #tpu.pipeline_mode<synchronous>, transform_indices = @transform_3, window_bounds = array<i64: 1, 256>}, {pipeline_mode = #tpu.pipeline_mode<synchronous>, transform_indices = @transform_4, window_bounds = array<i64: 256, 128>}, {pipeline_mode = #tpu.pipeline_mode<synchronous>, transform_indices = @transform_5, window_bounds = array<i64: 1, 128>}, {pipeline_mode = #tpu.pipeline_mode<synchronous>, transform_indices = @transform_6, window_bounds = array<i64: 128, 256>}, {pipeline_mode = #tpu.pipeline_mode<synchronous>, transform_indices = @transform_7, window_bounds = array<i64: 1, 256>}, {pipeline_mode = #tpu.pipeline_mode<synchronous>, transform_indices = @transform_8, window_bounds = array<i64: 256, 256>}, {pipeline_mode = #tpu.pipeline_mode<synchronous>, transform_indices = @transform_9, window_bounds = array<i64: 1, 256>}, {transform_indices = @transform_10, window_bounds = array<i64: 16, 256>}, {transform_indices = @transform_11, window_bounds = array<i64: 16, 128>}]} {
    %c0 = arith.constant 0 : index
    %c0_0 = arith.constant 0 : index
    %0 = vector.load %arg1[%c0, %c0_0] : memref<16x256xf32, #tpu.memory_space<vmem>>, vector<16x256xf32>
    %1 = arith.truncf %0 : vector<16x256xf32> to vector<16x256xbf16>
    %c0_1 = arith.constant 0 : index
    %c0_2 = arith.constant 0 : index
    %2 = vector.load %arg3[%c0_1, %c0_2] : memref<256x256xbf16, #tpu.memory_space<vmem>>, vector<256x256xbf16>
    %cst = arith.constant dense<0.000000e+00> : vector<16x256xf32>
    %3 = tpu.matmul %1, %2, %cst {dimension_numbers = #tpu.dot_dimension_numbers<[1], [0], [0], [1], [0, 0, 1, 1], [], []>} : vector<16x256xbf16>, vector<256x256xbf16>, vector<16x256xf32> -> vector<16x256xf32>
    %c0_3 = arith.constant 0 : index
    %c0_4 = arith.constant 0 : index
    %4 = vector.load %arg4[%c0_3, %c0_4] : memref<1x256xf32, #tpu.memory_space<vmem>>, vector<1x256xf32>
    %5 = vector.broadcast %4 : vector<1x256xf32> to vector<16x256xf32>
    %6 = arith.addf %3, %5 : vector<16x256xf32>
    %cst_5 = arith.constant 0.000000e+00 : f32
    %7 = vector.broadcast %cst_5 : f32 to vector<16x256xf32>
    %8 = arith.maximumf %6, %7 : vector<16x256xf32>
    %9 = arith.truncf %8 : vector<16x256xf32> to vector<16x256xbf16>
    %c0_6 = arith.constant 0 : index
    %c0_7 = arith.constant 0 : index
    %10 = vector.load %arg5[%c0_6, %c0_7] : memref<256x128xbf16, #tpu.memory_space<vmem>>, vector<256x128xbf16>
    %cst_8 = arith.constant dense<0.000000e+00> : vector<16x128xf32>
    %11 = tpu.matmul %9, %10, %cst_8 {dimension_numbers = #tpu.dot_dimension_numbers<[1], [0], [0], [1], [0, 0, 1, 1], [], []>} : vector<16x256xbf16>, vector<256x128xbf16>, vector<16x128xf32> -> vector<16x128xf32>
    %c0_9 = arith.constant 0 : index
    %c0_10 = arith.constant 0 : index
    %12 = vector.load %arg6[%c0_9, %c0_10] : memref<1x128xf32, #tpu.memory_space<vmem>>, vector<1x128xf32>
    %13 = vector.broadcast %12 : vector<1x128xf32> to vector<16x128xf32>
    %14 = arith.addf %11, %13 : vector<16x128xf32>
    %cst_11 = arith.constant 5.000000e-01 : f32
    %15 = vector.broadcast %cst_11 : f32 to vector<16x128xf32>
    %16 = arith.mulf %15, %14 : vector<16x128xf32>
    %17 = math.exp %16 : vector<16x128xf32>
    %c64_i32 = arith.constant 64 : i32
    %18 = tpu.dynamic_rotate %17 by %c64_i32 dim 1 : vector<16x128xf32>, i32 -> vector<16x128xf32>
    %c0_12 = arith.constant 0 : index
    %c0_13 = arith.constant 0 : index
    %19 = vector.load %arg2[%c0_12, %c0_13] : memref<16x32xf32, #tpu.memory_space<vmem>>, vector<16x32xf32>
    %c0_i32 = arith.constant 0 : i32
    %20 = arith.sitofp %c0_i32 : i32 to f32
    %21 = vector.broadcast %20 : f32 to vector<16x96xf32>
    %22 = tpu.concatenate %19, %21 in 1 : vector<16x32xf32>, vector<16x96xf32> -> vector<16x128xf32>
    %23 = arith.mulf %22, %18 : vector<16x128xf32>
    %24 = arith.addf %14, %23 : vector<16x128xf32>
    %25 = arith.truncf %24 : vector<16x128xf32> to vector<16x128xbf16>
    %c0_14 = arith.constant 0 : index
    %c0_15 = arith.constant 0 : index
    %26 = vector.load %arg7[%c0_14, %c0_15] : memref<128x256xbf16, #tpu.memory_space<vmem>>, vector<128x256xbf16>
    %cst_16 = arith.constant dense<0.000000e+00> : vector<16x256xf32>
    %27 = tpu.matmul %25, %26, %cst_16 {dimension_numbers = #tpu.dot_dimension_numbers<[1], [0], [0], [1], [0, 0, 1, 1], [], []>} : vector<16x128xbf16>, vector<128x256xbf16>, vector<16x256xf32> -> vector<16x256xf32>
    %c0_17 = arith.constant 0 : index
    %c0_18 = arith.constant 0 : index
    %28 = vector.load %arg8[%c0_17, %c0_18] : memref<1x256xf32, #tpu.memory_space<vmem>>, vector<1x256xf32>
    %29 = vector.broadcast %28 : vector<1x256xf32> to vector<16x256xf32>
    %30 = arith.addf %27, %29 : vector<16x256xf32>
    %cst_19 = arith.constant 0.000000e+00 : f32
    %31 = vector.broadcast %cst_19 : f32 to vector<16x256xf32>
    %32 = arith.maximumf %30, %31 : vector<16x256xf32>
    %33 = arith.truncf %32 : vector<16x256xf32> to vector<16x256xbf16>
    %c0_20 = arith.constant 0 : index
    %c0_21 = arith.constant 0 : index
    %34 = vector.load %arg9[%c0_20, %c0_21] : memref<256x256xbf16, #tpu.memory_space<vmem>>, vector<256x256xbf16>
    %cst_22 = arith.constant dense<0.000000e+00> : vector<16x256xf32>
    %35 = tpu.matmul %33, %34, %cst_22 {dimension_numbers = #tpu.dot_dimension_numbers<[1], [0], [0], [1], [0, 0, 1, 1], [], []>} : vector<16x256xbf16>, vector<256x256xbf16>, vector<16x256xf32> -> vector<16x256xf32>
    %c0_23 = arith.constant 0 : index
    %c0_24 = arith.constant 0 : index
    %36 = vector.load %arg10[%c0_23, %c0_24] : memref<1x256xf32, #tpu.memory_space<vmem>>, vector<1x256xf32>
    %37 = vector.broadcast %36 : vector<1x256xf32> to vector<16x256xf32>
    %38 = arith.addf %35, %37 : vector<16x256xf32>
    %39 = arith.negf %38 : vector<16x256xf32>
    %40 = math.exp %39 : vector<16x256xf32>
    %cst_25 = arith.constant 1.000000e+00 : f32
    %41 = vector.broadcast %cst_25 : f32 to vector<16x256xf32>
    %42 = arith.addf %41, %40 : vector<16x256xf32>
    %43 = arith.divf %41, %42 : vector<16x256xf32>
    %44 = arith.truncf %43 : vector<16x256xf32> to vector<16x256xbf16>
    %c0_26 = arith.constant 0 : index
    %c0_27 = arith.constant 0 : index
    %45 = vector.load %arg11[%c0_26, %c0_27] : memref<16x256xbf16, #tpu.memory_space<vmem>>, vector<16x256xbf16>
    tpu.vector_store %arg11[%c0_26, %c0_27], %44 {strides = array<i32>} : memref<16x256xbf16, #tpu.memory_space<vmem>>, vector<16x256xbf16>,
    %c0_28 = arith.constant 0 : index
    %c0_29 = arith.constant 0 : index
    %46 = vector.load %arg12[%c0_28, %c0_29] : memref<16x128xf32, #tpu.memory_space<vmem>>, vector<16x128xf32>
    tpu.vector_store %arg12[%c0_28, %c0_29], %14 {strides = array<i32>} : memref<16x128xf32, #tpu.memory_space<vmem>>, vector<16x128xf32>,
    return
  }
  func.func @transform_0(%arg0: i32) -> (i32, i32) {
    %c0_i32 = arith.constant 0 : i32
    %c0_i32_0 = arith.constant 0 : i32
    return %arg0, %c0_i32 : i32, i32
  }
  func.func @transform_1(%arg0: i32) -> (i32, i32) {
    %c0_i32 = arith.constant 0 : i32
    %c0_i32_0 = arith.constant 0 : i32
    return %arg0, %c0_i32 : i32, i32
  }
  func.func @transform_2(%arg0: i32) -> (i32, i32) {
    %c0_i32 = arith.constant 0 : i32
    %c0_i32_0 = arith.constant 0 : i32
    %c0_i32_1 = arith.constant 0 : i32
    return %c0_i32, %c0_i32_0 : i32, i32
  }
  func.func @transform_3(%arg0: i32) -> (i32, i32) {
    %c0_i32 = arith.constant 0 : i32
    %c0_i32_0 = arith.constant 0 : i32
    %c0_i32_1 = arith.constant 0 : i32
    return %c0_i32, %c0_i32_0 : i32, i32
  }
  func.func @transform_4(%arg0: i32) -> (i32, i32) {
    %c0_i32 = arith.constant 0 : i32
    %c0_i32_0 = arith.constant 0 : i32
    %c0_i32_1 = arith.constant 0 : i32
    return %c0_i32, %c0_i32_0 : i32, i32
  }
  func.func @transform_5(%arg0: i32) -> (i32, i32) {
    %c0_i32 = arith.constant 0 : i32
    %c0_i32_0 = arith.constant 0 : i32
    %c0_i32_1 = arith.constant 0 : i32
    return %c0_i32, %c0_i32_0 : i32, i32
  }
  func.func @transform_6(%arg0: i32) -> (i32, i32) {
    %c0_i32 = arith.constant 0 : i32
    %c0_i32_0 = arith.constant 0 : i32
    %c0_i32_1 = arith.constant 0 : i32
    return %c0_i32, %c0_i32_0 : i32, i32
  }
  func.func @transform_7(%arg0: i32) -> (i32, i32) {
    %c0_i32 = arith.constant 0 : i32
    %c0_i32_0 = arith.constant 0 : i32
    %c0_i32_1 = arith.constant 0 : i32
    return %c0_i32, %c0_i32_0 : i32, i32
  }
  func.func @transform_8(%arg0: i32) -> (i32, i32) {
    %c0_i32 = arith.constant 0 : i32
    %c0_i32_0 = arith.constant 0 : i32
    %c0_i32_1 = arith.constant 0 : i32
    return %c0_i32, %c0_i32_0 : i32, i32
  }
  func.func @transform_9(%arg0: i32) -> (i32, i32) {
    %c0_i32 = arith.constant 0 : i32
    %c0_i32_0 = arith.constant 0 : i32
    %c0_i32_1 = arith.constant 0 : i32
    return %c0_i32, %c0_i32_0 : i32, i32
  }
  func.func @transform_10(%arg0: i32) -> (i32, i32) {
    %c0_i32 = arith.constant 0 : i32
    %c0_i32_0 = arith.constant 0 : i32
    return %arg0, %c0_i32 : i32, i32
  }
  func.func @transform_11(%arg0: i32) -> (i32, i32) {
    %c0_i32 = arith.constant 0 : i32
    %c0_i32_0 = arith.constant 0 : i32
    return %arg0, %c0_i32 : i32, i32
  }
}

</mosaic_0001>

<llo_original>
// kernel: tpu_custom_call.1
$region0: #{tpu_custom_call.1}
  #allocation0 [shape = 'u32[]', space=smem, size = 0x4, offset = 0x4, fixed_abs, tag = 'smem constant byte address 0x4 - core index']
  #allocation1 [shape = 'u32[72,128]{1,0:T(1,128)}', space=vmem, size = 0x9000, scoped, tag = 'internal scratch']
  %s0 = inlined_call_operand.hbm [shape: f32[32,256], index: 0, kind: input, shape index: {}]
  %s1 = inlined_call_operand.hbm [shape: f32[32,32], index: 1, kind: input, shape index: {}]
  %s2 = inlined_call_operand.hbm [shape: bf16[256,256], index: 2, kind: input, shape index: {}]
  %s3 = inlined_call_operand.vmem [shape: f32[1,256], index: 3, kind: input, shape index: {}]
  %s4 = inlined_call_operand.hbm [shape: bf16[256,128], index: 4, kind: input, shape index: {}]
  %s5 = inlined_call_operand.hbm [shape: f32[1,128], index: 5, kind: input, shape index: {}]
  %s6 = inlined_call_operand.hbm [shape: bf16[128,256], index: 6, kind: input, shape index: {}]
  %s7 = inlined_call_operand.vmem [shape: f32[1,256], index: 7, kind: input, shape index: {}]
  %s8 = inlined_call_operand.hbm [shape: bf16[256,256], index: 8, kind: input, shape index: {}]
  %s9 = inlined_call_operand.vmem [shape: f32[1,256], index: 9, kind: input, shape index: {}]
  %s10 = inlined_call_operand.hbm [shape: bf16[32,256], index: 10, kind: output, shape index: {0}]
  %s11 = inlined_call_operand.hbm [shape: f32[32,128], index: 11, kind: output, shape index: {1}]
  %12 = xla_tuple %s10, %s11
  %s13 = sld [smem:[#allocation0]]
  $region109: #{tpu_custom_call.1} parent=0
    _
  %s15 = ssub.s32 1, %s13
  %s16 = scalar_select 0, %s15, %s13
  $region1: #{tpu_custom_call.1} parent=0
    #allocation2 [shape = 'u8[32768]{0}', space=vmem, size = 0x8000, scoped, tag = 'input window, operand 0']
    #allocation3 [shape = 's32[2]{0}', space=sflag, size = 0x8, scoped, tag = 'scoped memory for tpu_custom_call.1']
    #allocation4 [shape = 's32[2]{0}', space=sflag, size = 0x8, scoped, tag = 'scoped memory for tpu_custom_call.1']
    #allocation5 [shape = 'u8[16384]{0}', space=vmem, size = 0x4000, scoped, tag = 'input window, operand 1']
    #allocation6 [shape = 's32[2]{0}', space=sflag, size = 0x8, scoped, tag = 'scoped memory for tpu_custom_call.1']
    #allocation7 [shape = 'u8[131072]{0}', space=vmem, size = 0x20000, scoped, tag = 'input window, operand 2, single buffered']
    #allocation8 [shape = 'u8[65536]{0}', space=vmem, size = 0x10000, scoped, tag = 'input window, operand 4, single buffered']
    #allocation9 [shape = 's32[1]{0}', space=sflag, size = 0x4, scoped, tag = 'scoped memory for tpu_custom_call.1']
    #allocation10 [shape = 'u8[512]{0}', space=vmem, size = 0x400, scoped, tag = 'input window, operand 5, single buffered']
    #allocation11 [shape = 'u8[65536]{0}', space=vmem, size = 0x10000, scoped, tag = 'input window, operand 6, single buffered']
    #allocation12 [shape = 's32[1]{0}', space=sflag, size = 0x4, scoped, tag = 'scoped memory for tpu_custom_call.1']
    #allocation13 [shape = 'u8[131072]{0}', space=vmem, size = 0x20000, scoped, tag = 'input window, operand 8, single buffered']
    #allocation14 [shape = 'u8[16384]{0}', space=vmem, size = 0x4000, scoped, tag = 'output window, operand 0']
    #allocation15 [shape = 'u8[16384]{0}', space=vmem, size = 0x4000, scoped, tag = 'output window, operand 1']
    #allocation16 [shape = 's32[2]{0}', space=sflag, size = 0x8, scoped, tag = 'scoped memory for tpu_custom_call.1']
    %17 = vsyncpa [#allocation3], 0
    %s18 = scalar_lea.sflag [#allocation3], 1
    %19 = vsyncpa %s18, 0
    %20 = vsyncpa [#allocation6], 0
    %s21 = scalar_lea.sflag [#allocation6], 1
    %22 = vsyncpa %s21, 0
    %23 = vsyncpa [#allocation9], 0
    %24 = vsyncpa [#allocation12], 0
    %25 = vsyncpa [#allocation4], 0
    %s26 = scalar_lea.sflag [#allocation4], 1
    %27 = vsyncpa %s26, 0
    %28 = vsyncpa [#allocation16], 0
    %s29 = scalar_lea.sflag [#allocation16], 1
    %30 = vsyncpa %s29, 0
    loop: start=0, step=1, limit=4
    $region2: #{tpu_custom_call.1} parent=1 // loop_pre_header
      _
    $region3: #{tpu_custom_call.1} parent=1 // loop_header
      %s32 = sphi 0, %s36
      %p33 = scmp.ge.s32.totalorder %s32, 4
      %s42 = sphi 0, %s44
      %s45 = sphi 0, %s42
      %s46 = sphi 0, %s45
      %s62 = sphi 0, %s46
      %s68 = sphi 0, %s70
      %s71 = sphi 0, %s68
      %s72 = sphi 0, %s71
      %s88 = sphi 0, %s72
      %s92 = sphi 0, %s92
      %s94 = sphi 0, %s92
      %s95 = sphi 0, %s94
      %s109 = sphi 0, %s95
      %s113 = sphi 0, %s113
      %s115 = sphi 0, %s113
      %s116 = sphi 0, %s115
      %s130 = sphi 0, %s116
      %s134 = sphi 0, %s134
      %s136 = sphi 0, %s134
      %s137 = sphi 0, %s136
      %s151 = sphi 0, %s137
      %s155 = sphi 0, %s155
      %s157 = sphi 0, %s155
      %s158 = sphi 0, %s157
      %s172 = sphi 0, %s158
      %s176 = sphi 0, %s176
      %s178 = sphi 0, %s176
      %s179 = sphi 0, %s178
      %s193 = sphi 0, %s179
      %s197 = sphi 0, %s197
      %s199 = sphi 0, %s197
      %s200 = sphi 0, %s199
      %s214 = sphi 0, %s200
      %s218 = sphi 0, %s218
      %s220 = sphi 0, %s218
      %s221 = sphi 0, %s220
      %s235 = sphi 0, %s221
      %s239 = sphi 0, %s239
      %s241 = sphi 0, %s239
      %s242 = sphi 0, %s241
      %s256 = sphi 0, %s242
      %s262 = sphi 0, %s264
      %s265 = sphi 0, %s262
      %s266 = sphi 0, %s265
      %s282 = sphi 0, %s266
      %s288 = sphi 0, %s290
      %s291 = sphi 0, %s288
      %s292 = sphi 0, %s291
      %s308 = sphi 0, %s292
    $region4: #{tpu_custom_call.1} parent=1 // loop_header_branch
      %35 = sbr.rel (%p33) target = $region8
    $region5: #{tpu_custom_call.1} parent=1 // loop_body
      %s37 = ssub.s32 %s32, 1
      %s38 = ssub.s32 %s32, 2
      %s39 = sadd.s32 %s32, 1
      %s40 = ssub.s32 %s32, %s39
      %p41 = scmp.eq.s32.totalorder %s40, 0
      %s43 = sadd.s32 %s42, 1
      %s44 = scalar_select %p41, %s42, %s43
      %p47 = pneg %p41
      %p48 = scmp.eq.s32.totalorder %s32, 1
      %p49 = por %p47, %p48
      %p50 = scmp.ne.s32.totalorder %s42, %s45
      %p51 = scmp.eq.s32.totalorder %s32, 0
      %p52 = por %p50, %p51
      %p53 = scmp.ne.s32.totalorder %s42, %s45
      %p54 = scmp.eq.s32.totalorder %s37, 1
      %p55 = por %p53, %p54
      %p56 = scmp.ne.s32.totalorder %s45, %s46
      %p57 = scmp.eq.s32.totalorder %s37, 0
      %p58 = por %p56, %p57
      %p59 = scmp.ne.s32.totalorder %s45, %s46
      %p60 = scmp.eq.s32.totalorder %s38, 1
      %p61 = por %p59, %p60
      %p63 = scmp.ne.s32.totalorder %s46, %s62
      %p64 = scmp.eq.s32.totalorder %s38, 0
      %p65 = por %p63, %p64
      %s66 = ssub.s32 %s32, %s39
      %p67 = scmp.eq.s32.totalorder %s66, 0
      %s69 = sadd.s32 %s68, 1
      %s70 = scalar_select %p67, %s68, %s69
      %p73 = pneg %p67
      %p74 = scmp.eq.s32.totalorder %s32, 1
      %p75 = por %p73, %p74
      %p76 = scmp.ne.s32.totalorder %s68, %s71
      %p77 = scmp.eq.s32.totalorder %s32, 0
      %p78 = por %p76, %p77
      %p79 = scmp.ne.s32.totalorder %s68, %s71
      %p80 = scmp.eq.s32.totalorder %s37, 1
      %p81 = por %p79, %p80
      %p82 = scmp.ne.s32.totalorder %s71, %s72
      %p83 = scmp.eq.s32.totalorder %s37, 0
      %p84 = por %p82, %p83
      %p85 = scmp.ne.s32.totalorder %s71, %s72
      %p86 = scmp.eq.s32.totalorder %s38, 1
      %p87 = por %p85, %p86
      %p89 = scmp.ne.s32.totalorder %s72, %s88
      %p90 = scmp.eq.s32.totalorder %s38, 0
      %p91 = por %p89, %p90
      %s93 = sadd.s32 %s92, 1
      %p96 = scmp.eq.s32.totalorder %s32, 1
      %p97 = scmp.ne.s32.totalorder %s92, %s94
      %p98 = scmp.eq.s32.totalorder %s32, 0
      %p99 = por %p97, %p98
      %p100 = scmp.ne.s32.totalorder %s92, %s94
      %p101 = scmp.eq.s32.totalorder %s37, 1
      %p102 = por %p100, %p101
      %p103 = scmp.ne.s32.totalorder %s94, %s95
      %p104 = scmp.eq.s32.totalorder %s37, 0
      %p105 = por %p103, %p104
      %p106 = scmp.ne.s32.totalorder %s94, %s95
      %p107 = scmp.eq.s32.totalorder %s38, 1
      %p108 = por %p106, %p107
      %p110 = scmp.ne.s32.totalorder %s95, %s109
      %p111 = scmp.eq.s32.totalorder %s38, 0
      %p112 = por %p110, %p111
      %s114 = sadd.s32 %s113, 1
      %p117 = scmp.eq.s32.totalorder %s32, 1
      %p118 = scmp.ne.s32.totalorder %s113, %s115
      %p119 = scmp.eq.s32.totalorder %s32, 0
      %p120 = por %p118, %p119
      %p121 = scmp.ne.s32.totalorder %s113, %s115
      %p122 = scmp.eq.s32.totalorder %s37, 1
      %p123 = por %p121, %p122
      %p124 = scmp.ne.s32.totalorder %s115, %s116
      %p125 = scmp.eq.s32.totalorder %s37, 0
      %p126 = por %p124, %p125
      %p127 = scmp.ne.s32.totalorder %s115, %s116
      %p128 = scmp.eq.s32.totalorder %s38, 1
      %p129 = por %p127, %p128
      %p131 = scmp.ne.s32.totalorder %s116, %s130
      %p132 = scmp.eq.s32.totalorder %s38, 0
      %p133 = por %p131, %p132
      %s135 = sadd.s32 %s134, 1
      %p138 = scmp.eq.s32.totalorder %s32, 1
      %p139 = scmp.ne.s32.totalorder %s134, %s136
      %p140 = scmp.eq.s32.totalorder %s32, 0
      %p141 = por %p139, %p140
      %p142 = scmp.ne.s32.totalorder %s134, %s136
      %p143 = scmp.eq.s32.totalorder %s37, 1
      %p144 = por %p142, %p143
      %p145 = scmp.ne.s32.totalorder %s136, %s137
      %p146 = scmp.eq.s32.totalorder %s37, 0
      %p147 = por %p145, %p146
      %p148 = scmp.ne.s32.totalorder %s136, %s137
      %p149 = scmp.eq.s32.totalorder %s38, 1
      %p150 = por %p148, %p149
      %p152 = scmp.ne.s32.totalorder %s137, %s151
      %p153 = scmp.eq.s32.totalorder %s38, 0
      %p154 = por %p152, %p153
      %s156 = sadd.s32 %s155, 1
      %p159 = scmp.eq.s32.totalorder %s32, 1
      %p160 = scmp.ne.s32.totalorder %s155, %s157
      %p161 = scmp.eq.s32.totalorder %s32, 0
      %p162 = por %p160, %p161
      %p163 = scmp.ne.s32.totalorder %s155, %s157
      %p164 = scmp.eq.s32.totalorder %s37, 1
      %p165 = por %p163, %p164
      %p166 = scmp.ne.s32.totalorder %s157, %s158
      %p167 = scmp.eq.s32.totalorder %s37, 0
      %p168 = por %p166, %p167
      %p169 = scmp.ne.s32.totalorder %s157, %s158
      %p170 = scmp.eq.s32.totalorder %s38, 1
      %p171 = por %p169, %p170
      %p173 = scmp.ne.s32.totalorder %s158, %s172
      %p174 = scmp.eq.s32.totalorder %s38, 0
      %p175 = por %p173, %p174
      %s177 = sadd.s32 %s176, 1
      %p180 = scmp.eq.s32.totalorder %s32, 1
      %p181 = scmp.ne.s32.totalorder %s176, %s178
      %p182 = scmp.eq.s32.totalorder %s32, 0
      %p183 = por %p181, %p182
      %p184 = scmp.ne.s32.totalorder %s176, %s178
      %p185 = scmp.eq.s32.totalorder %s37, 1
      %p186 = por %p184, %p185
      %p187 = scmp.ne.s32.totalorder %s178, %s179
      %p188 = scmp.eq.s32.totalorder %s37, 0
      %p189 = por %p187, %p188
      %p190 = scmp.ne.s32.totalorder %s178, %s179
      %p191 = scmp.eq.s32.totalorder %s38, 1
      %p192 = por %p190, %p191
      %p194 = scmp.ne.s32.totalorder %s179, %s193
      %p195 = scmp.eq.s32.totalorder %s38, 0
      %p196 = por %p194, %p195
      %s198 = sadd.s32 %s197, 1
      %p201 = scmp.eq.s32.totalorder %s32, 1
      %p202 = scmp.ne.s32.totalorder %s197, %s199
      %p203 = scmp.eq.s32.totalorder %s32, 0
      %p204 = por %p202, %p203
      %p205 = scmp.ne.s32.totalorder %s197, %s199
      %p206 = scmp.eq.s32.totalorder %s37, 1
      %p207 = por %p205, %p206
      %p208 = scmp.ne.s32.totalorder %s199, %s200
      %p209 = scmp.eq.s32.totalorder %s37, 0
      %p210 = por %p208, %p209
      %p211 = scmp.ne.s32.totalorder %s199, %s200
      %p212 = scmp.eq.s32.totalorder %s38, 1
      %p213 = por %p211, %p212
      %p215 = scmp.ne.s32.totalorder %s200, %s214
      %p216 = scmp.eq.s32.totalorder %s38, 0
      %p217 = por %p215, %p216
      %s219 = sadd.s32 %s218, 1
      %p222 = scmp.eq.s32.totalorder %s32, 1
      %p223 = scmp.ne.s32.totalorder %s218, %s220
      %p224 = scmp.eq.s32.totalorder %s32, 0
      %p225 = por %p223, %p224
      %p226 = scmp.ne.s32.totalorder %s218, %s220
      %p227 = scmp.eq.s32.totalorder %s37, 1
      %p228 = por %p226, %p227
      %p229 = scmp.ne.s32.totalorder %s220, %s221
      %p230 = scmp.eq.s32.totalorder %s37, 0
      %p231 = por %p229, %p230
      %p232 = scmp.ne.s32.totalorder %s220, %s221
      %p233 = scmp.eq.s32.totalorder %s38, 1
      %p234 = por %p232, %p233
      %p236 = scmp.ne.s32.totalorder %s221, %s235
      %p237 = scmp.eq.s32.totalorder %s38, 0
      %p238 = por %p236, %p237
      %s240 = sadd.s32 %s239, 1
      %p243 = scmp.eq.s32.totalorder %s32, 1
      %p244 = scmp.ne.s32.totalorder %s239, %s241
      %p245 = scmp.eq.s32.totalorder %s32, 0
      %p246 = por %p244, %p245
      %p247 = scmp.ne.s32.totalorder %s239, %s241
      %p248 = scmp.eq.s32.totalorder %s37, 1
      %p249 = por %p247, %p248
      %p250 = scmp.ne.s32.totalorder %s241, %s242
      %p251 = scmp.eq.s32.totalorder %s37, 0
      %p252 = por %p250, %p251
      %p253 = scmp.ne.s32.totalorder %s241, %s242
      %p254 = scmp.eq.s32.totalorder %s38, 1
      %p255 = por %p253, %p254
      %p257 = scmp.ne.s32.totalorder %s242, %s256
      %p258 = scmp.eq.s32.totalorder %s38, 0
      %p259 = por %p257, %p258
      %s260 = ssub.s32 %s32, %s39
      %p261 = scmp.eq.s32.totalorder %s260, 0
      %s263 = sadd.s32 %s262, 1
      %s264 = scalar_select %p261, %s262, %s263
      %p267 = pneg %p261
      %p268 = scmp.eq.s32.totalorder %s32, 1
      %p269 = por %p267, %p268
      %p270 = scmp.ne.s32.totalorder %s262, %s265
      %p271 = scmp.eq.s32.totalorder %s32, 0
      %p272 = por %p270, %p271
      %p273 = scmp.ne.s32.totalorder %s262, %s265
      %p274 = scmp.eq.s32.totalorder %s37, 1
      %p275 = por %p273, %p274
      %p276 = scmp.ne.s32.totalorder %s265, %s266
      %p277 = scmp.eq.s32.totalorder %s37, 0
      %p278 = por %p276, %p277
      %p279 = scmp.ne.s32.totalorder %s265, %s266
      %p280 = scmp.eq.s32.totalorder %s38, 1
      %p281 = por %p279, %p280
      %p283 = scmp.ne.s32.totalorder %s266, %s282
      %p284 = scmp.eq.s32.totalorder %s38, 0
      %p285 = por %p283, %p284
      %s286 = ssub.s32 %s32, %s39
      %p287 = scmp.eq.s32.totalorder %s286, 0
      %s289 = sadd.s32 %s288, 1
      %s290 = scalar_select %p287, %s288, %s289
      %p293 = pneg %p287
      %p294 = scmp.eq.s32.totalorder %s32, 1
      %p295 = por %p293, %p294
      %p296 = scmp.ne.s32.totalorder %s288, %s291
      %p297 = scmp.eq.s32.totalorder %s32, 0
      %p298 = por %p296, %p297
      %p299 = scmp.ne.s32.totalorder %s288, %s291
      %p300 = scmp.eq.s32.totalorder %s37, 1
      %p301 = por %p299, %p300
      %p302 = scmp.ne.s32.totalorder %s291, %s292
      %p303 = scmp.eq.s32.totalorder %s37, 0
      %p304 = por %p302, %p303
      %p305 = scmp.ne.s32.totalorder %s291, %s292
      %p306 = scmp.eq.s32.totalorder %s38, 1
      %p307 = por %p305, %p306
      %p309 = scmp.ne.s32.totalorder %s292, %s308
      %p310 = scmp.eq.s32.totalorder %s38, 0
      %p311 = por %p309, %p310
      %p312 = scmp.le.s32.totalorder 1, %s32
      %p313 = scmp.lt.s32.totalorder %s32, 3
      %p314 = pnand %p312, %p313
      %p315 = pneg %p314
      // Predicated region
      $region9: #{tpu_custom_call.1} parent=5 // pred_check
        _
      $region10: #{tpu_custom_call.1} parent=5 // pred_check_branch
        %317 = sbr.rel (%p314) target = $region12
      $region11: #{tpu_custom_call.1} parent=5 // pred_region
        %s318 = ssub.s32 %s32, 1
        // Predicated region
        $region13: #{tpu_custom_call.1} parent=11 // pred_check
          %p319 = pneg %p105
        $region14: #{tpu_custom_call.1} parent=11 // pred_check_branch
          %321 = sbr.rel (%p319) target = $region16
        $region15: #{tpu_custom_call.1} parent=11 // pred_region
          %323 = vsyncadd [#allocation6], 0
          %s324 = sshll.u32 %s2, 4
          %s325 = int_to_ptr.hbm [resolvable:$true] %s324
          %s326 = sshll.u32 [#allocation7], 4
          %s327 = int_to_ptr.vmem [resolvable:$true] %s326
          %332 = dma.hbm_to_vmem [thread:$0]  %s325, 4096, %s327, [#allocation6], 128, 128, 8
        $region16: #{tpu_custom_call.1} parent=11 // pred_fallthru
          _
        // Predicated region
        $region17: #{tpu_custom_call.1} parent=11 // pred_check
          %p333 = pneg %p126
        $region18: #{tpu_custom_call.1} parent=11 // pred_check_branch
          %335 = sbr.rel (%p333) target = $region20
        $region19: #{tpu_custom_call.1} parent=11 // pred_region
          _
        $region20: #{tpu_custom_call.1} parent=11 // pred_fallthru
          _
        // Predicated region
        $region21: #{tpu_custom_call.1} parent=11 // pred_check
          %p336 = pneg %p147
        $region22: #{tpu_custom_call.1} parent=11 // pred_check_branch
          %338 = sbr.rel (%p336) target = $region24
        $region23: #{tpu_custom_call.1} parent=11 // pred_region
          %340 = vsyncadd [#allocation9], 0
          %s341 = sshll.u32 %s4, 4
          %s342 = int_to_ptr.hbm [resolvable:$true] %s341
          %s343 = sshll.u32 [#allocation8], 4
          %s344 = int_to_ptr.vmem [resolvable:$true] %s343
          %349 = dma.hbm_to_vmem [thread:$0]  %s342, 2048, %s344, [#allocation9], 64, 64, 4
        $region24: #{tpu_custom_call.1} parent=11 // pred_fallthru
          _
        // Predicated region
        $region25: #{tpu_custom_call.1} parent=11 // pred_check
          %p350 = pneg %p168
        $region26: #{tpu_custom_call.1} parent=11 // pred_check_branch
          %352 = sbr.rel (%p350) target = $region28
        $region27: #{tpu_custom_call.1} parent=11 // pred_region
          %354 = vsyncadd [#allocation9], 0
          %s356 = sshll.u32 %s5, 4
          %s357 = int_to_ptr.hbm [resolvable:$true] %s356
          %s358 = sshll.u32 [#allocation10], 4
          %s359 = int_to_ptr.vmem [resolvable:$true] %s358
          %361 = dma.hbm_to_vmem [thread:$0]  %s357, 16, %s359, [#allocation9]
        $region28: #{tpu_custom_call.1} parent=11 // pred_fallthru
          _
        // Predicated region
        $region29: #{tpu_custom_call.1} parent=11 // pred_check
          %p362 = pneg %p189
        $region30: #{tpu_custom_call.1} parent=11 // pred_check_branch
          %364 = sbr.rel (%p362) target = $region32
        $region31: #{tpu_custom_call.1} parent=11 // pred_region
          %366 = vsyncadd [#allocation12], 0
          %s367 = sshll.u32 %s6, 4
          %s368 = int_to_ptr.hbm [resolvable:$true] %s367
          %s369 = sshll.u32 [#allocation11], 4
          %s370 = int_to_ptr.vmem [resolvable:$true] %s369
          %375 = dma.hbm_to_vmem [thread:$0]  %s368, 2048, %s370, [#allocation12], 128, 128, 8
        $region32: #{tpu_custom_call.1} parent=11 // pred_fallthru
          _
        // Predicated region
        $region33: #{tpu_custom_call.1} parent=11 // pred_check
          %p376 = pneg %p210
        $region34: #{tpu_custom_call.1} parent=11 // pred_check_branch
          %378 = sbr.rel (%p376) target = $region36
        $region35: #{tpu_custom_call.1} parent=11 // pred_region
          _
        $region36: #{tpu_custom_call.1} parent=11 // pred_fallthru
          _
        // Predicated region
        $region37: #{tpu_custom_call.1} parent=11 // pred_check
          %p379 = pneg %p231
        $region38: #{tpu_custom_call.1} parent=11 // pred_check_branch
          %381 = sbr.rel (%p379) target = $region40
        $region39: #{tpu_custom_call.1} parent=11 // pred_region
          %383 = vsyncadd [#allocation12], 0
          %s384 = sshll.u32 %s8, 4
          %s385 = int_to_ptr.hbm [resolvable:$true] %s384
          %s386 = sshll.u32 [#allocation13], 4
          %s387 = int_to_ptr.vmem [resolvable:$true] %s386
          %392 = dma.hbm_to_vmem [thread:$0]  %s385, 4096, %s387, [#allocation12], 128, 128, 8
        $region40: #{tpu_custom_call.1} parent=11 // pred_fallthru
          _
        // Predicated region
        $region41: #{tpu_custom_call.1} parent=11 // pred_check
          %p393 = pneg %p252
        $region42: #{tpu_custom_call.1} parent=11 // pred_check_branch
          %395 = sbr.rel (%p393) target = $region44
        $region43: #{tpu_custom_call.1} parent=11 // pred_region
          _
        $region44: #{tpu_custom_call.1} parent=11 // pred_fallthru
          _
      $region12: #{tpu_custom_call.1} parent=5 // pred_fallthru
        _
      %p396 = scmp.lt.s32.totalorder %s32, 2
      // Predicated region
      $region45: #{tpu_custom_call.1} parent=5 // pred_check
        %p397 = pneg %p396
      $region46: #{tpu_custom_call.1} parent=5 // pred_check_branch
        %399 = sbr.rel (%p397) target = $region48
      $region47: #{tpu_custom_call.1} parent=5 // pred_region
        // Predicated region
        $region49: #{tpu_custom_call.1} parent=47 // pred_check
          %p400 = pneg %p52
        $region50: #{tpu_custom_call.1} parent=47 // pred_check_branch
          %402 = sbr.rel (%p400) target = $region52
        $region51: #{tpu_custom_call.1} parent=47 // pred_region
          %s403 = sand.u32 %s42, 1
          %s404 = scalar_lea.sflag [#allocation3], %s403
          %s405 = sand.u32 %s42, 1
          %s406 = smul.addr %s405, 32
          %s407 = scalar_lea.vmem [#allocation2], %s406
          %s408 = smul.u32 2, %s32
          %410 = vsyncadd %s404, 0
          %s411 = smul.addr %s408, 2
          %s412 = smul.addr %s411, 8
          %s413 = scalar_lea.hbm %s0, %s412
          %s414 = sshll.u32 %s413, 4
          %s415 = int_to_ptr.hbm [resolvable:$true] %s414
          %s416 = sshll.u32 %s407, 4
          %s417 = int_to_ptr.vmem [resolvable:$true] %s416
          %422 = dma.hbm_to_vmem [thread:$0]  %s415, 512, %s417, %s404, 256, 256, 16
        $region52: #{tpu_custom_call.1} parent=47 // pred_fallthru
          _
        // Predicated region
        $region53: #{tpu_custom_call.1} parent=47 // pred_check
          %p423 = pneg %p78
        $region54: #{tpu_custom_call.1} parent=47 // pred_check_branch
          %425 = sbr.rel (%p423) target = $region56
        $region55: #{tpu_custom_call.1} parent=47 // pred_region
          %s426 = sand.u32 %s32, 1
          %s427 = scalar_lea.sflag [#allocation6], %s426
          %s428 = sand.u32 %s68, 1
          %s429 = smul.addr %s428, 16
          %s430 = scalar_lea.vmem [#allocation5], %s429
          %s431 = smul.u32 2, %s32
          %433 = vsyncadd %s427, 0
          %s434 = smul.addr %s431, 8
          %s435 = scalar_lea.hbm %s1, %s434
          %s436 = sshll.u32 %s435, 4
          %s437 = int_to_ptr.hbm [resolvable:$true] %s436
          %s438 = sshll.u32 %s430, 4
          %s439 = int_to_ptr.vmem [resolvable:$true] %s438
          %444 = dma.hbm_to_vmem [thread:$0]  %s437, 256, %s439, %s427, 128, 128, 8
        $region56: #{tpu_custom_call.1} parent=47 // pred_fallthru
          _
      $region48: #{tpu_custom_call.1} parent=5 // pred_fallthru
        _
      %p445 = scmp.le.s32.totalorder 1, %s32
      %p446 = scmp.lt.s32.totalorder %s32, 3
      %p447 = pnand %p445, %p446
      %p448 = pneg %p447
      // Predicated region
      $region57: #{tpu_custom_call.1} parent=5 // pred_check
        _
      $region58: #{tpu_custom_call.1} parent=5 // pred_check_branch
        %450 = sbr.rel (%p447) target = $region60
      $region59: #{tpu_custom_call.1} parent=5 // pred_region
        %s451 = ssub.s32 %s32, 1
        %s452 = sand.u32 %s45, 1
        %s453 = scalar_lea.sflag [#allocation3], %s452
        %s454 = sand.u32 %s45, 1
        %s455 = smul.addr %s454, 32
        %s456 = scalar_lea.vmem [#allocation2], %s455
        // Predicated region
        $region61: #{tpu_custom_call.1} parent=59 // pred_check
          %p457 = pneg %p58
        $region62: #{tpu_custom_call.1} parent=59 // pred_check_branch
          %459 = sbr.rel (%p457) target = $region64
        $region63: #{tpu_custom_call.1} parent=59 // pred_region
          %461 = dma.done %s453, 512
        $region64: #{tpu_custom_call.1} parent=59 // pred_fallthru
          _
        %s462 = sand.u32 %s37, 1
        %s463 = scalar_lea.sflag [#allocation6], %s462
        %s464 = sand.u32 %s71, 1
        %s465 = smul.addr %s464, 16
        %s466 = scalar_lea.vmem [#allocation5], %s465
        // Predicated region
        $region65: #{tpu_custom_call.1} parent=59 // pred_check
          %p467 = pneg %p84
        $region66: #{tpu_custom_call.1} parent=59 // pred_check_branch
          %469 = sbr.rel (%p467) target = $region68
        $region67: #{tpu_custom_call.1} parent=59 // pred_region
          %471 = dma.done %s463, 256
        $region68: #{tpu_custom_call.1} parent=59 // pred_fallthru
          _
        // Predicated region
        $region69: #{tpu_custom_call.1} parent=59 // pred_check
          %p472 = pneg %p105
        $region70: #{tpu_custom_call.1} parent=59 // pred_check_branch
          %474 = sbr.rel (%p472) target = $region72
        $region71: #{tpu_custom_call.1} parent=59 // pred_region
          %476 = dma.done [#allocation6], 4096
        $region72: #{tpu_custom_call.1} parent=59 // pred_fallthru
          _
        // Predicated region
        $region73: #{tpu_custom_call.1} parent=59 // pred_check
          %p477 = pneg %p147
        $region74: #{tpu_custom_call.1} parent=59 // pred_check_branch
          %479 = sbr.rel (%p477) target = $region76
        $region75: #{tpu_custom_call.1} parent=59 // pred_region
          %481 = dma.done [#allocation9], 2048
        $region76: #{tpu_custom_call.1} parent=59 // pred_fallthru
          _
        // Predicated region
        $region77: #{tpu_custom_call.1} parent=59 // pred_check
          %p482 = pneg %p168
        $region78: #{tpu_custom_call.1} parent=59 // pred_check_branch
          %484 = sbr.rel (%p482) target = $region80
        $region79: #{tpu_custom_call.1} parent=59 // pred_region
          %486 = dma.done [#allocation9], 16
        $region80: #{tpu_custom_call.1} parent=59 // pred_fallthru
          _
        // Predicated region
        $region81: #{tpu_custom_call.1} parent=59 // pred_check
          %p487 = pneg %p189
        $region82: #{tpu_custom_call.1} parent=59 // pred_check_branch
          %489 = sbr.rel (%p487) target = $region84
        $region83: #{tpu_custom_call.1} parent=59 // pred_region
          %491 = dma.done [#allocation12], 2048
        $region84: #{tpu_custom_call.1} parent=59 // pred_fallthru
          _
        // Predicated region
        $region85: #{tpu_custom_call.1} parent=59 // pred_check
          %p492 = pneg %p231
        $region86: #{tpu_custom_call.1} parent=59 // pred_check_branch
          %494 = sbr.rel (%p492) target = $region88
        $region87: #{tpu_custom_call.1} parent=59 // pred_region
          %496 = dma.done [#allocation12], 4096
        $region88: #{tpu_custom_call.1} parent=59 // pred_fallthru
          _
        %s497 = sand.u32 %s45, 1
        %s498 = scalar_lea.sflag [#allocation3], %s497
        %s499 = sand.u32 %s45, 1
        %s500 = smul.addr %s499, 32
        %s501 = scalar_lea.vmem [#allocation2], %s500
        %p502 = pneg %p58
        %p503 = pneg %p55
        %s504 = sand.u32 %s37, 1
        %s505 = scalar_lea.sflag [#allocation6], %s504
        %s506 = sand.u32 %s71, 1
        %s507 = smul.addr %s506, 16
        %s508 = scalar_lea.vmem [#allocation5], %s507
        %p509 = pneg %p84
        %p510 = pneg %p81
        %p511 = pneg %p105
        %p512 = pneg %p102
        %p513 = pneg %p126
        %p514 = pneg %p123
        %p515 = pneg %p147
        %p516 = pneg %p144
        %p517 = pneg %p168
        %p518 = pneg %p165
        %p519 = pneg %p189
        %p520 = pneg %p186
        %p521 = pneg %p210
        %p522 = pneg %p207
        %p523 = pneg %p231
        %p524 = pneg %p228
        %p525 = pneg %p252
        %p526 = pneg %p249
        %p527 = pneg %p278
        %p528 = pneg %p275
        %s529 = sand.u32 %s265, 1
        %s530 = scalar_lea.sflag [#allocation4], %s529
        %s531 = sand.u32 %s265, 1
        %s532 = smul.addr %s531, 16
        %s533 = scalar_lea.vmem [#allocation14], %s532
        %p534 = pneg %p304
        %p535 = pneg %p301
        %s536 = sand.u32 %s291, 1
        %s537 = scalar_lea.sflag [#allocation16], %s536
        %s538 = sand.u32 %s291, 1
        %s539 = smul.addr %s538, 16
        %s540 = scalar_lea.vmem [#allocation15], %s539
        %s541 = smul.u32 2, %s37
        %s542 = smul.u32 2, %s37
        %s543 = smul.u32 2, %s37
        %s544 = smul.u32 2, %s37
        %v545 = vld [vmem:[%s456] sm:$0xff]
        %v546 = vld [vmem:[%s456 + $0x8] sm:$0xff]
        %v547 = vld [vmem:[%s456 + $0x10] sm:$0xff]
        %v548 = vld [vmem:[%s456 + $0x18] sm:$0xff]
        %v549 = vpack.c.bf16 %v547, %v545
        %v550 = vpack.c.bf16 %v548, %v546
        %v551 = vld [vmem:[#allocation7] sm:$0xff]
        %v552 = vld [vmem:[#allocation7 + $0x8] sm:$0xff]
        %v553 = vld [vmem:[#allocation7 + $0x10] sm:$0xff]
        %v554 = vld [vmem:[#allocation7 + $0x18] sm:$0xff]
        %v555 = vld [vmem:[#allocation7 + $0x20] sm:$0xff]
        %v556 = vld [vmem:[#allocation7 + $0x28] sm:$0xff]
        %v557 = vld [vmem:[#allocation7 + $0x30] sm:$0xff]
        %v558 = vld [vmem:[#allocation7 + $0x38] sm:$0xff]
        %v559 = vld [vmem:[#allocation7 + $0x40] sm:$0xff]
        %v560 = vld [vmem:[#allocation7 + $0x48] sm:$0xff]
        %v561 = vld [vmem:[#allocation7 + $0x50] sm:$0xff]
        %v562 = vld [vmem:[#allocation7 + $0x58] sm:$0xff]
        %v563 = vld [vmem:[#allocation7 + $0x60] sm:$0xff]
        %v564 = vld [vmem:[#allocation7 + $0x68] sm:$0xff]
        %v565 = vld [vmem:[#allocation7 + $0x70] sm:$0xff]
        %v566 = vld [vmem:[#allocation7 + $0x78] sm:$0xff]
        %v567 = vld [vmem:[#allocation7 + $0x80] sm:$0xff]
        %v568 = vld [vmem:[#allocation7 + $0x88] sm:$0xff]
        %v569 = vld [vmem:[#allocation7 + $0x90] sm:$0xff]
        %v570 = vld [vmem:[#allocation7 + $0x98] sm:$0xff]
        %v571 = vld [vmem:[#allocation7 + $0xa0] sm:$0xff]
        %v572 = vld [vmem:[#allocation7 + $0xa8] sm:$0xff]
        %v573 = vld [vmem:[#allocation7 + $0xb0] sm:$0xff]
        %v574 = vld [vmem:[#allocation7 + $0xb8] sm:$0xff]
        %v575 = vld [vmem:[#allocation7 + $0xc0] sm:$0xff]
        %v576 = vld [vmem:[#allocation7 + $0xc8] sm:$0xff]
        %v577 = vld [vmem:[#allocation7 + $0xd0] sm:$0xff]
        %v578 = vld [vmem:[#allocation7 + $0xd8] sm:$0xff]
        %v579 = vld [vmem:[#allocation7 + $0xe0] sm:$0xff]
        %v580 = vld [vmem:[#allocation7 + $0xe8] sm:$0xff]
        %v581 = vld [vmem:[#allocation7 + $0xf0] sm:$0xff]
        %v582 = vld [vmem:[#allocation7 + $0xf8] sm:$0xff]
        %v583 = vld [vmem:[%s3] sm:$0x3]
        %v585 = vperm.slane %v583, 0
        %v586 = vperm.slane %v583, 1
        %v621 = vunpack.c.l.b16 %v551
        %v622 = vunpack.c.h.b16 %v551
        %v623 = vunpack.c.l.b16 %v552
        %v624 = vunpack.c.h.b16 %v552
        %v625 = vunpack.c.l.b16 %v553
        %v626 = vunpack.c.h.b16 %v553
        %v627 = vunpack.c.l.b16 %v554
        %v628 = vunpack.c.h.b16 %v554
        %v629 = vunpack.c.l.b16 %v555
        %v630 = vunpack.c.h.b16 %v555
        %v631 = vunpack.c.l.b16 %v556
        %v632 = vunpack.c.h.b16 %v556
        %v633 = vunpack.c.l.b16 %v557
        %v634 = vunpack.c.h.b16 %v557
        %v635 = vunpack.c.l.b16 %v558
        %v636 = vunpack.c.h.b16 %v558
        %v637 = vunpack.c.l.b16 %v559
        %v638 = vunpack.c.h.b16 %v559
        %v639 = vunpack.c.l.b16 %v560
        %v640 = vunpack.c.h.b16 %v560
        %v641 = vunpack.c.l.b16 %v561
        %v642 = vunpack.c.h.b16 %v561
        %v643 = vunpack.c.l.b16 %v562
        %v644 = vunpack.c.h.b16 %v562
        %v645 = vunpack.c.l.b16 %v563
        %v646 = vunpack.c.h.b16 %v563
        %v647 = vunpack.c.l.b16 %v564
        %v648 = vunpack.c.h.b16 %v564
        %v649 = vunpack.c.l.b16 %v565
        %v650 = vunpack.c.h.b16 %v565
        %v651 = vunpack.c.l.b16 %v566
        %v652 = vunpack.c.h.b16 %v566
        %v653 = vunpack.c.l.b16 %v567
        %v654 = vunpack.c.h.b16 %v567
        %v655 = vunpack.c.l.b16 %v568
        %v656 = vunpack.c.h.b16 %v568
        %v657 = vunpack.c.l.b16 %v569
        %v658 = vunpack.c.h.b16 %v569
        %v659 = vunpack.c.l.b16 %v570
        %v660 = vunpack.c.h.b16 %v570
        %v661 = vunpack.c.l.b16 %v571
        %v662 = vunpack.c.h.b16 %v571
        %v663 = vunpack.c.l.b16 %v572
        %v664 = vunpack.c.h.b16 %v572
        %v665 = vunpack.c.l.b16 %v573
        %v666 = vunpack.c.h.b16 %v573
        %v667 = vunpack.c.l.b16 %v574
        %v668 = vunpack.c.h.b16 %v574
        %v669 = vunpack.c.l.b16 %v575
        %v670 = vunpack.c.h.b16 %v575
        %v671 = vunpack.c.l.b16 %v576
        %v672 = vunpack.c.h.b16 %v576
        %v673 = vunpack.c.l.b16 %v577
        %v674 = vunpack.c.h.b16 %v577
        %v675 = vunpack.c.l.b16 %v578
        %v676 = vunpack.c.h.b16 %v578
        %v677 = vunpack.c.l.b16 %v579
        %v678 = vunpack.c.h.b16 %v579
        %v679 = vunpack.c.l.b16 %v580
        %v680 = vunpack.c.h.b16 %v580
        %v681 = vunpack.c.l.b16 %v581
        %v682 = vunpack.c.h.b16 %v581
        %v683 = vunpack.c.l.b16 %v582
        %v684 = vunpack.c.h.b16 %v582
        %v685 = vpack.c.b16 %v623, %v621
        %v686 = vpack.c.b16 %v624, %v622
        %v687 = vpack.c.b16 %v627, %v625
        %v688 = vpack.c.b16 %v628, %v626
        %v689 = vpack.c.b16 %v631, %v629
        %v690 = vpack.c.b16 %v632, %v630
        %v691 = vpack.c.b16 %v635, %v633
        %v692 = vpack.c.b16 %v636, %v634
        %v693 = vpack.c.b16 %v639, %v637
        %v694 = vpack.c.b16 %v640, %v638
        %v695 = vpack.c.b16 %v643, %v641
        %v696 = vpack.c.b16 %v644, %v642
        %v697 = vpack.c.b16 %v647, %v645
        %v698 = vpack.c.b16 %v648, %v646
        %v699 = vpack.c.b16 %v651, %v649
        %v700 = vpack.c.b16 %v652, %v650
        %v701 = vpack.c.b16 %v655, %v653
        %v702 = vpack.c.b16 %v656, %v654
        %v703 = vpack.c.b16 %v659, %v657
        %v704 = vpack.c.b16 %v660, %v658
        %v705 = vpack.c.b16 %v663, %v661
        %v706 = vpack.c.b16 %v664, %v662
        %v707 = vpack.c.b16 %v667, %v665
        %v708 = vpack.c.b16 %v668, %v666
        %v709 = vpack.c.b16 %v671, %v669
        %v710 = vpack.c.b16 %v672, %v670
        %v711 = vpack.c.b16 %v675, %v673
        %v712 = vpack.c.b16 %v676, %v674
        %v713 = vpack.c.b16 %v679, %v677
        %v714 = vpack.c.b16 %v680, %v678
        %v715 = vpack.c.b16 %v683, %v681
        %v716 = vpack.c.b16 %v684, %v682
        %749 = vmatpush.bf16.msra.mxu0 %v699
        %750 = vmatpush.bf16.msra.mxu0 %v697
        %751 = vmatpush.bf16.msra.mxu0 %v695
        %752 = vmatpush.bf16.msra.mxu0 %v693
        %753 = vmatpush.bf16.msra.mxu0 %v691
        %754 = vmatpush.bf16.msra.mxu0 %v689
        %755 = vmatpush.bf16.msra.mxu0 %v687
        %756 = vmatpush.bf16.msra.mxu0 %v685
        %757 = vmatmul.bf16.gmra.mxu0 %v549
        %v758 = vpop.f32.mrf.mxu0
        %v759 = vadd.f32 %v585, %v758
        %v760 = vpop.f32.mrf.mxu0
        %v761 = vadd.f32 %v585, %v760
        %762 = vdwg.mxu0
        %763 = vmatpush.bf16.msra.mxu0 %v715
        %764 = vmatpush.bf16.msra.mxu0 %v713
        %765 = vmatpush.bf16.msra.mxu0 %v711
        %766 = vmatpush.bf16.msra.mxu0 %v709
        %767 = vmatpush.bf16.msra.mxu0 %v707
        %768 = vmatpush.bf16.msra.mxu0 %v705
        %769 = vmatpush.bf16.msra.mxu0 %v703
        %770 = vmatpush.bf16.msra.mxu0 %v701
        %771 = vmatmul.bf16.gmra.mxu0 %v550
        %v772 = vpop.f32.mrf.mxu0
        %v773 = vadd.f32 %v759, %v772
        %v774 = vpop.f32.mrf.mxu0
        %v775 = vadd.f32 %v761, %v774
        %776 = vdwg.mxu0
        %777 = vmatpush.bf16.msra.mxu0 %v700
        %778 = vmatpush.bf16.msra.mxu0 %v698
        %779 = vmatpush.bf16.msra.mxu0 %v696
        %780 = vmatpush.bf16.msra.mxu0 %v694
        %781 = vmatpush.bf16.msra.mxu0 %v692
        %782 = vmatpush.bf16.msra.mxu0 %v690
        %783 = vmatpush.bf16.msra.mxu0 %v688
        %784 = vmatpush.bf16.msra.mxu0 %v686
        %785 = vmatmul.bf16.gmra.mxu0 %v549
        %v786 = vpop.f32.mrf.mxu0
        %v787 = vadd.f32 %v586, %v786
        %v788 = vpop.f32.mrf.mxu0
        %v789 = vadd.f32 %v586, %v788
        %790 = vdwg.mxu0
        %791 = vmatpush.bf16.msra.mxu0 %v716
        %792 = vmatpush.bf16.msra.mxu0 %v714
        %793 = vmatpush.bf16.msra.mxu0 %v712
        %794 = vmatpush.bf16.msra.mxu0 %v710
        %795 = vmatpush.bf16.msra.mxu0 %v708
        %796 = vmatpush.bf16.msra.mxu0 %v706
        %797 = vmatpush.bf16.msra.mxu0 %v704
        %798 = vmatpush.bf16.msra.mxu0 %v702
        %799 = vmatmul.bf16.gmra.mxu0 %v550
        %v800 = vpop.f32.mrf.mxu0
        %v801 = vadd.f32 %v787, %v800
        %v802 = vpop.f32.mrf.mxu0
        %v803 = vadd.f32 %v789, %v802
        %804 = vdwg.mxu0
        %v805 = vmax.f32 %v773, 0.0
        %v806 = vmax.f32 %v801, 0.0
        %v807 = vmax.f32 %v775, 0.0
        %v808 = vmax.f32 %v803, 0.0
        %v809 = vpack.c.bf16 %v807, %v805
        %v810 = vpack.c.bf16 %v808, %v806
        %v811 = vld [vmem:[#allocation8] sm:$0xf]
        %v812 = vld [vmem:[#allocation8 + $0x4] sm:$0xf]
        %v813 = vld [vmem:[#allocation8 + $0x8] sm:$0xf]
        %v814 = vld [vmem:[#allocation8 + $0xc] sm:$0xf]
        %v815 = vld [vmem:[#allocation8 + $0x10] sm:$0xf]
        %v816 = vld [vmem:[#allocation8 + $0x14] sm:$0xf]
        %v817 = vld [vmem:[#allocation8 + $0x18] sm:$0xf]
        %v818 = vld [vmem:[#allocation8 + $0x1c] sm:$0xf]
        %v819 = vld [vmem:[#allocation8 + $0x20] sm:$0xf]
        %v820 = vld [vmem:[#allocation8 + $0x24] sm:$0xf]
        %v821 = vld [vmem:[#allocation8 + $0x28] sm:$0xf]
        %v822 = vld [vmem:[#allocation8 + $0x2c] sm:$0xf]
        %v823 = vld [vmem:[#allocation8 + $0x30] sm:$0xf]
        %v824 = vld [vmem:[#allocation8 + $0x34] sm:$0xf]
        %v825 = vld [vmem:[#allocation8 + $0x38] sm:$0xf]
        %v826 = vld [vmem:[#allocation8 + $0x3c] sm:$0xf]
        %v827 = vld [vmem:[#allocation8 + $0x40] sm:$0xf]
        %v828 = vld [vmem:[#allocation8 + $0x44] sm:$0xf]
        %v829 = vld [vmem:[#allocation8 + $0x48] sm:$0xf]
        %v830 = vld [vmem:[#allocation8 + $0x4c] sm:$0xf]
        %v831 = vld [vmem:[#allocation8 + $0x50] sm:$0xf]
        %v832 = vld [vmem:[#allocation8 + $0x54] sm:$0xf]
        %v833 = vld [vmem:[#allocation8 + $0x58] sm:$0xf]
        %v834 = vld [vmem:[#allocation8 + $0x5c] sm:$0xf]
        %v835 = vld [vmem:[#allocation8 + $0x60] sm:$0xf]
        %v836 = vld [vmem:[#allocation8 + $0x64] sm:$0xf]
        %v837 = vld [vmem:[#allocation8 + $0x68] sm:$0xf]
        %v838 = vld [vmem:[#allocation8 + $0x6c] sm:$0xf]
        %v839 = vld [vmem:[#allocation8 + $0x70] sm:$0xf]
        %v840 = vld [vmem:[#allocation8 + $0x74] sm:$0xf]
        %v841 = vld [vmem:[#allocation8 + $0x78] sm:$0xf]
        %v842 = vld [vmem:[#allocation8 + $0x7c] sm:$0xf]
        %v843 = vld [vmem:[#allocation10] sm:$0x1]
        %v845 = vperm.slane %v843, 0
        %v879 = vunpack.c.l.b16 %v811
        %v880 = vunpack.c.l.b16 %v812
        %v881 = vunpack.c.l.b16 %v813
        %v882 = vunpack.c.l.b16 %v814
        %v883 = vunpack.c.l.b16 %v815
        %v884 = vunpack.c.l.b16 %v816
        %v885 = vunpack.c.l.b16 %v817
        %v886 = vunpack.c.l.b16 %v818
        %v887 = vunpack.c.l.b16 %v819
        %v888 = vunpack.c.l.b16 %v820
        %v889 = vunpack.c.l.b16 %v821
        %v890 = vunpack.c.l.b16 %v822
        %v891 = vunpack.c.l.b16 %v823
        %v892 = vunpack.c.l.b16 %v824
        %v893 = vunpack.c.l.b16 %v825
        %v894 = vunpack.c.l.b16 %v826
        %v895 = vunpack.c.l.b16 %v827
        %v896 = vunpack.c.l.b16 %v828
        %v897 = vunpack.c.l.b16 %v829
        %v898 = vunpack.c.l.b16 %v830
        %v899 = vunpack.c.l.b16 %v831
        %v900 = vunpack.c.l.b16 %v832
        %v901 = vunpack.c.l.b16 %v833
        %v902 = vunpack.c.l.b16 %v834
        %v903 = vunpack.c.l.b16 %v835
        %v904 = vunpack.c.l.b16 %v836
        %v905 = vunpack.c.l.b16 %v837
        %v906 = vunpack.c.l.b16 %v838
        %v907 = vunpack.c.l.b16 %v839
        %v908 = vunpack.c.l.b16 %v840
        %v909 = vunpack.c.l.b16 %v841
        %v910 = vunpack.c.l.b16 %v842
        %v911 = vpack.c.b16 %v880, %v879
        %v912 = vpack.c.b16 %v882, %v881
        %v913 = vpack.c.b16 %v884, %v883
        %v914 = vpack.c.b16 %v886, %v885
        %v915 = vpack.c.b16 %v888, %v887
        %v916 = vpack.c.b16 %v890, %v889
        %v917 = vpack.c.b16 %v892, %v891
        %v918 = vpack.c.b16 %v894, %v893
        %v919 = vpack.c.b16 %v896, %v895
        %v920 = vpack.c.b16 %v898, %v897
        %v921 = vpack.c.b16 %v900, %v899
        %v922 = vpack.c.b16 %v902, %v901
        %v923 = vpack.c.b16 %v904, %v903
        %v924 = vpack.c.b16 %v906, %v905
        %v925 = vpack.c.b16 %v908, %v907
        %v926 = vpack.c.b16 %v910, %v909
        %943 = vmatpush.bf16.msra.mxu0 %v918
        %944 = vmatpush.bf16.msra.mxu0 %v917
        %945 = vmatpush.bf16.msra.mxu0 %v916
        %946 = vmatpush.bf16.msra.mxu0 %v915
        %947 = vmatpush.bf16.msra.mxu0 %v914
        %948 = vmatpush.bf16.msra.mxu0 %v913
        %949 = vmatpush.bf16.msra.mxu0 %v912
        %950 = vmatpush.bf16.msra.mxu0 %v911
        %951 = vmatmul.bf16.gmra.mxu0 %v809
        %v952 = vpop.f32.mrf.mxu0
        %v953 = vadd.f32 %v845, %v952
        %v954 = vpop.f32.mrf.mxu0
        %v955 = vadd.f32 %v845, %v954
        %956 = vdwg.mxu0
        %957 = vmatpush.bf16.msra.mxu0 %v926
        %958 = vmatpush.bf16.msra.mxu0 %v925
        %959 = vmatpush.bf16.msra.mxu0 %v924
        %960 = vmatpush.bf16.msra.mxu0 %v923
        %961 = vmatpush.bf16.msra.mxu0 %v922
        %962 = vmatpush.bf16.msra.mxu0 %v921
        %963 = vmatpush.bf16.msra.mxu0 %v920
        %964 = vmatpush.bf16.msra.mxu0 %v919
        %965 = vmatmul.bf16.gmra.mxu0 %v810
        %v966 = vpop.f32.mrf.mxu0
        %v967 = vadd.f32 %v953, %v966
        %v968 = vpop.f32.mrf.mxu0
        %v969 = vadd.f32 %v955, %v968
        %970 = vdwg.mxu0
        %v971 = vmul.f32 %v967, 0.5
        %v972 = vmul.f32 %v969, 0.5
        %v973 = vmul.f32 %v971, 1.442695
        %v974 = vpow.pop %v973
        %v975 = vmul.f32 %v972, 1.442695
        %v976 = vpow.pop %v975
        %977 = vrot.lane.b32.xlu0 %v974, 64
        %v978 = vpop.permute.xlu0 %977
        %979 = vrot.lane.b32.xlu0 %v976, 64
        %v980 = vpop.permute.xlu0 %979
        %v981 = vld [vmem:[%s466] sm:$0xff]
        %v982 = vld [vmem:[%s466 + $0x8] sm:$0xff]
        %vm983 = vcmask 261120
        %v984 = vsel %vm983, %v981, 0.0
        %v985 = vsel %vm983, %v982, 0.0
        %v986 = vmul.f32 %v984, %v978
        %v987 = vmul.f32 %v985, %v980
        %v988 = vadd.f32 %v967, %v986
        %v989 = vadd.f32 %v969, %v987
        %v990 = vpack.c.bf16 %v989, %v988
        %v991 = vld [vmem:[#allocation11] sm:$0xff]
        %v992 = vld [vmem:[#allocation11 + $0x8] sm:$0xff]
        %v993 = vld [vmem:[#allocation11 + $0x10] sm:$0xff]
        %v994 = vld [vmem:[#allocation11 + $0x18] sm:$0xff]
        %v995 = vld [vmem:[#allocation11 + $0x20] sm:$0xff]
        %v996 = vld [vmem:[#allocation11 + $0x28] sm:$0xff]
        %v997 = vld [vmem:[#allocation11 + $0x30] sm:$0xff]
        %v998 = vld [vmem:[#allocation11 + $0x38] sm:$0xff]
        %v999 = vld [vmem:[#allocation11 + $0x40] sm:$0xff]
        %v1000 = vld [vmem:[#allocation11 + $0x48] sm:$0xff]
        %v1001 = vld [vmem:[#allocation11 + $0x50] sm:$0xff]
        %v1002 = vld [vmem:[#allocation11 + $0x58] sm:$0xff]
        %v1003 = vld [vmem:[#allocation11 + $0x60] sm:$0xff]
        %v1004 = vld [vmem:[#allocation11 + $0x68] sm:$0xff]
        %v1005 = vld [vmem:[#allocation11 + $0x70] sm:$0xff]
        %v1006 = vld [vmem:[#allocation11 + $0x78] sm:$0xff]
        %v1007 = vld [vmem:[%s7] sm:$0x3]
        %v1009 = vperm.slane %v1007, 0
        %v1010 = vperm.slane %v1007, 1
        %v1029 = vunpack.c.l.b16 %v991
        %v1030 = vunpack.c.h.b16 %v991
        %v1031 = vunpack.c.l.b16 %v992
        %v1032 = vunpack.c.h.b16 %v992
        %v1033 = vunpack.c.l.b16 %v993
        %v1034 = vunpack.c.h.b16 %v993
        %v1035 = vunpack.c.l.b16 %v994
        %v1036 = vunpack.c.h.b16 %v994
        %v1037 = vunpack.c.l.b16 %v995
        %v1038 = vunpack.c.h.b16 %v995
        %v1039 = vunpack.c.l.b16 %v996
        %v1040 = vunpack.c.h.b16 %v996
        %v1041 = vunpack.c.l.b16 %v997
        %v1042 = vunpack.c.h.b16 %v997
        %v1043 = vunpack.c.l.b16 %v998
        %v1044 = vunpack.c.h.b16 %v998
        %v1045 = vunpack.c.l.b16 %v999
        %v1046 = vunpack.c.h.b16 %v999
        %v1047 = vunpack.c.l.b16 %v1000
        %v1048 = vunpack.c.h.b16 %v1000
        %v1049 = vunpack.c.l.b16 %v1001
        %v1050 = vunpack.c.h.b16 %v1001
        %v1051 = vunpack.c.l.b16 %v1002
        %v1052 = vunpack.c.h.b16 %v1002
        %v1053 = vunpack.c.l.b16 %v1003
        %v1054 = vunpack.c.h.b16 %v1003
        %v1055 = vunpack.c.l.b16 %v1004
        %v1056 = vunpack.c.h.b16 %v1004
        %v1057 = vunpack.c.l.b16 %v1005
        %v1058 = vunpack.c.h.b16 %v1005
        %v1059 = vunpack.c.l.b16 %v1006
        %v1060 = vunpack.c.h.b16 %v1006
        %v1061 = vpack.c.b16 %v1031, %v1029
        %v1062 = vpack.c.b16 %v1032, %v1030
        %v1063 = vpack.c.b16 %v1035, %v1033
        %v1064 = vpack.c.b16 %v1036, %v1034
        %v1065 = vpack.c.b16 %v1039, %v1037
        %v1066 = vpack.c.b16 %v1040, %v1038
        %v1067 = vpack.c.b16 %v1043, %v1041
        %v1068 = vpack.c.b16 %v1044, %v1042
        %v1069 = vpack.c.b16 %v1047, %v1045
        %v1070 = vpack.c.b16 %v1048, %v1046
        %v1071 = vpack.c.b16 %v1051, %v1049
        %v1072 = vpack.c.b16 %v1052, %v1050
        %v1073 = vpack.c.b16 %v1055, %v1053
        %v1074 = vpack.c.b16 %v1056, %v1054
        %v1075 = vpack.c.b16 %v1059, %v1057
        %v1076 = vpack.c.b16 %v1060, %v1058
        %1093 = vmatpush.bf16.msra.mxu0 %v1075
        %1094 = vmatpush.bf16.msra.mxu0 %v1073
        %1095 = vmatpush.bf16.msra.mxu0 %v1071
        %1096 = vmatpush.bf16.msra.mxu0 %v1069
        %1097 = vmatpush.bf16.msra.mxu0 %v1067
        %1098 = vmatpush.bf16.msra.mxu0 %v1065
        %1099 = vmatpush.bf16.msra.mxu0 %v1063
        %1100 = vmatpush.bf16.msra.mxu0 %v1061
        %1101 = vmatmul.bf16.gmra.mxu0 %v990
        %v1102 = vpop.f32.mrf.mxu0
        %v1103 = vadd.f32 %v1009, %v1102
        %v1104 = vpop.f32.mrf.mxu0
        %v1105 = vadd.f32 %v1009, %v1104
        %1106 = vdwg.mxu0
        %1107 = vmatpush.bf16.msra.mxu0 %v1076
        %1108 = vmatpush.bf16.msra.mxu0 %v1074
        %1109 = vmatpush.bf16.msra.mxu0 %v1072
        %1110 = vmatpush.bf16.msra.mxu0 %v1070
        %1111 = vmatpush.bf16.msra.mxu0 %v1068
        %1112 = vmatpush.bf16.msra.mxu0 %v1066
        %1113 = vmatpush.bf16.msra.mxu0 %v1064
        %1114 = vmatpush.bf16.msra.mxu0 %v1062
        %1115 = vmatmul.bf16.gmra.mxu0 %v990
        %v1116 = vpop.f32.mrf.mxu0
        %v1117 = vadd.f32 %v1010, %v1116
        %v1118 = vpop.f32.mrf.mxu0
        %v1119 = vadd.f32 %v1010, %v1118
        %1120 = vdwg.mxu0
        %v1121 = vmax.f32 %v1103, 0.0
        %v1122 = vmax.f32 %v1117, 0.0
        %v1123 = vmax.f32 %v1105, 0.0
        %v1124 = vmax.f32 %v1119, 0.0
        %v1125 = vpack.c.bf16 %v1123, %v1121
        %v1126 = vpack.c.bf16 %v1124, %v1122
        %v1127 = vld [vmem:[#allocation13] sm:$0xff]
        %v1128 = vld [vmem:[#allocation13 + $0x8] sm:$0xff]
        %v1129 = vld [vmem:[#allocation13 + $0x10] sm:$0xff]
        %v1130 = vld [vmem:[#allocation13 + $0x18] sm:$0xff]
        %v1131 = vld [vmem:[#allocation13 + $0x20] sm:$0xff]
        %v1132 = vld [vmem:[#allocation13 + $0x28] sm:$0xff]
        %v1133 = vld [vmem:[#allocation13 + $0x30] sm:$0xff]
        %v1134 = vld [vmem:[#allocation13 + $0x38] sm:$0xff]
        %v1135 = vld [vmem:[#allocation13 + $0x40] sm:$0xff]
        %v1136 = vld [vmem:[#allocation13 + $0x48] sm:$0xff]
        %v1137 = vld [vmem:[#allocation13 + $0x50] sm:$0xff]
        %v1138 = vld [vmem:[#allocation13 + $0x58] sm:$0xff]
        %v1139 = vld [vmem:[#allocation13 + $0x60] sm:$0xff]
        %v1140 = vld [vmem:[#allocation13 + $0x68] sm:$0xff]
        %v1141 = vld [vmem:[#allocation13 + $0x70] sm:$0xff]
        %v1142 = vld [vmem:[#allocation13 + $0x78] sm:$0xff]
        %v1143 = vld [vmem:[#allocation13 + $0x80] sm:$0xff]
        %v1144 = vld [vmem:[#allocation13 + $0x88] sm:$0xff]
        %v1145 = vld [vmem:[#allocation13 + $0x90] sm:$0xff]
        %v1146 = vld [vmem:[#allocation13 + $0x98] sm:$0xff]
        %v1147 = vld [vmem:[#allocation13 + $0xa0] sm:$0xff]
        %v1148 = vld [vmem:[#allocation13 + $0xa8] sm:$0xff]
        %v1149 = vld [vmem:[#allocation13 + $0xb0] sm:$0xff]
        %v1150 = vld [vmem:[#allocation13 + $0xb8] sm:$0xff]
        %v1151 = vld [vmem:[#allocation13 + $0xc0] sm:$0xff]
        %v1152 = vld [vmem:[#allocation13 + $0xc8] sm:$0xff]
        %v1153 = vld [vmem:[#allocation13 + $0xd0] sm:$0xff]
        %v1154 = vld [vmem:[#allocation13 + $0xd8] sm:$0xff]
        %v1155 = vld [vmem:[#allocation13 + $0xe0] sm:$0xff]
        %v1156 = vld [vmem:[#allocation13 + $0xe8] sm:$0xff]
        %v1157 = vld [vmem:[#allocation13 + $0xf0] sm:$0xff]
        %v1158 = vld [vmem:[#allocation13 + $0xf8] sm:$0xff]
        %v1159 = vld [vmem:[%s9] sm:$0x3]
        %v1161 = vperm.slane %v1159, 0
        %v1162 = vperm.slane %v1159, 1
        %v1197 = vunpack.c.l.b16 %v1127
        %v1198 = vunpack.c.h.b16 %v1127
        %v1199 = vunpack.c.l.b16 %v1128
        %v1200 = vunpack.c.h.b16 %v1128
        %v1201 = vunpack.c.l.b16 %v1129
        %v1202 = vunpack.c.h.b16 %v1129
        %v1203 = vunpack.c.l.b16 %v1130
        %v1204 = vunpack.c.h.b16 %v1130
        %v1205 = vunpack.c.l.b16 %v1131
        %v1206 = vunpack.c.h.b16 %v1131
        %v1207 = vunpack.c.l.b16 %v1132
        %v1208 = vunpack.c.h.b16 %v1132
        %v1209 = vunpack.c.l.b16 %v1133
        %v1210 = vunpack.c.h.b16 %v1133
        %v1211 = vunpack.c.l.b16 %v1134
        %v1212 = vunpack.c.h.b16 %v1134
        %v1213 = vunpack.c.l.b16 %v1135
        %v1214 = vunpack.c.h.b16 %v1135
        %v1215 = vunpack.c.l.b16 %v1136
        %v1216 = vunpack.c.h.b16 %v1136
        %v1217 = vunpack.c.l.b16 %v1137
        %v1218 = vunpack.c.h.b16 %v1137
        %v1219 = vunpack.c.l.b16 %v1138
        %v1220 = vunpack.c.h.b16 %v1138
        %v1221 = vunpack.c.l.b16 %v1139
        %v1222 = vunpack.c.h.b16 %v1139
        %v1223 = vunpack.c.l.b16 %v1140
        %v1224 = vunpack.c.h.b16 %v1140
        %v1225 = vunpack.c.l.b16 %v1141
        %v1226 = vunpack.c.h.b16 %v1141
        %v1227 = vunpack.c.l.b16 %v1142
        %v1228 = vunpack.c.h.b16 %v1142
        %v1229 = vunpack.c.l.b16 %v1143
        %v1230 = vunpack.c.h.b16 %v1143
        %v1231 = vunpack.c.l.b16 %v1144
        %v1232 = vunpack.c.h.b16 %v1144
        %v1233 = vunpack.c.l.b16 %v1145
        %v1234 = vunpack.c.h.b16 %v1145
        %v1235 = vunpack.c.l.b16 %v1146
        %v1236 = vunpack.c.h.b16 %v1146
        %v1237 = vunpack.c.l.b16 %v1147
        %v1238 = vunpack.c.h.b16 %v1147
        %v1239 = vunpack.c.l.b16 %v1148
        %v1240 = vunpack.c.h.b16 %v1148
        %v1241 = vunpack.c.l.b16 %v1149
        %v1242 = vunpack.c.h.b16 %v1149
        %v1243 = vunpack.c.l.b16 %v1150
        %v1244 = vunpack.c.h.b16 %v1150
        %v1245 = vunpack.c.l.b16 %v1151
        %v1246 = vunpack.c.h.b16 %v1151
        %v1247 = vunpack.c.l.b16 %v1152
        %v1248 = vunpack.c.h.b16 %v1152
        %v1249 = vunpack.c.l.b16 %v1153
        %v1250 = vunpack.c.h.b16 %v1153
        %v1251 = vunpack.c.l.b16 %v1154
        %v1252 = vunpack.c.h.b16 %v1154
        %v1253 = vunpack.c.l.b16 %v1155
        %v1254 = vunpack.c.h.b16 %v1155
        %v1255 = vunpack.c.l.b16 %v1156
        %v1256 = vunpack.c.h.b16 %v1156
        %v1257 = vunpack.c.l.b16 %v1157
        %v1258 = vunpack.c.h.b16 %v1157
        %v1259 = vunpack.c.l.b16 %v1158
        %v1260 = vunpack.c.h.b16 %v1158
        %v1261 = vpack.c.b16 %v1199, %v1197
        %v1262 = vpack.c.b16 %v1200, %v1198
        %v1263 = vpack.c.b16 %v1203, %v1201
        %v1264 = vpack.c.b16 %v1204, %v1202
        %v1265 = vpack.c.b16 %v1207, %v1205
        %v1266 = vpack.c.b16 %v1208, %v1206
        %v1267 = vpack.c.b16 %v1211, %v1209
        %v1268 = vpack.c.b16 %v1212, %v1210
        %v1269 = vpack.c.b16 %v1215, %v1213
        %v1270 = vpack.c.b16 %v1216, %v1214
        %v1271 = vpack.c.b16 %v1219, %v1217
        %v1272 = vpack.c.b16 %v1220, %v1218
        %v1273 = vpack.c.b16 %v1223, %v1221
        %v1274 = vpack.c.b16 %v1224, %v1222
        %v1275 = vpack.c.b16 %v1227, %v1225
        %v1276 = vpack.c.b16 %v1228, %v1226
        %v1277 = vpack.c.b16 %v1231, %v1229
        %v1278 = vpack.c.b16 %v1232, %v1230
        %v1279 = vpack.c.b16 %v1235, %v1233
        %v1280 = vpack.c.b16 %v1236, %v1234
        %v1281 = vpack.c.b16 %v1239, %v1237
        %v1282 = vpack.c.b16 %v1240, %v1238
        %v1283 = vpack.c.b16 %v1243, %v1241
        %v1284 = vpack.c.b16 %v1244, %v1242
        %v1285 = vpack.c.b16 %v1247, %v1245
        %v1286 = vpack.c.b16 %v1248, %v1246
        %v1287 = vpack.c.b16 %v1251, %v1249
        %v1288 = vpack.c.b16 %v1252, %v1250
        %v1289 = vpack.c.b16 %v1255, %v1253
        %v1290 = vpack.c.b16 %v1256, %v1254
        %v1291 = vpack.c.b16 %v1259, %v1257
        %v1292 = vpack.c.b16 %v1260, %v1258
        %1325 = vmatpush.bf16.msra.mxu0 %v1275
        %1326 = vmatpush.bf16.msra.mxu0 %v1273
        %1327 = vmatpush.bf16.msra.mxu0 %v1271
        %1328 = vmatpush.bf16.msra.mxu0 %v1269
        %1329 = vmatpush.bf16.msra.mxu0 %v1267
        %1330 = vmatpush.bf16.msra.mxu0 %v1265
        %1331 = vmatpush.bf16.msra.mxu0 %v1263
        %1332 = vmatpush.bf16.msra.mxu0 %v1261
        %1333 = vmatmul.bf16.gmra.mxu0 %v1125
        %v1334 = vpop.f32.mrf.mxu0
        %v1335 = vadd.f32 %v1161, %v1334
        %v1336 = vpop.f32.mrf.mxu0
        %v1337 = vadd.f32 %v1161, %v1336
        %1338 = vdwg.mxu0
        %1339 = vmatpush.bf16.msra.mxu0 %v1291
        %1340 = vmatpush.bf16.msra.mxu0 %v1289
        %1341 = vmatpush.bf16.msra.mxu0 %v1287
        %1342 = vmatpush.bf16.msra.mxu0 %v1285
        %1343 = vmatpush.bf16.msra.mxu0 %v1283
        %1344 = vmatpush.bf16.msra.mxu0 %v1281
        %1345 = vmatpush.bf16.msra.mxu0 %v1279
        %1346 = vmatpush.bf16.msra.mxu0 %v1277
        %1347 = vmatmul.bf16.gmra.mxu0 %v1126
        %v1348 = vpop.f32.mrf.mxu0
        %v1349 = vadd.f32 %v1335, %v1348
        %v1350 = vpop.f32.mrf.mxu0
        %v1351 = vadd.f32 %v1337, %v1350
        %1352 = vdwg.mxu0
        %1353 = vmatpush.bf16.msra.mxu0 %v1276
        %1354 = vmatpush.bf16.msra.mxu0 %v1274
        %1355 = vmatpush.bf16.msra.mxu0 %v1272
        %1356 = vmatpush.bf16.msra.mxu0 %v1270
        %1357 = vmatpush.bf16.msra.mxu0 %v1268
        %1358 = vmatpush.bf16.msra.mxu0 %v1266
        %1359 = vmatpush.bf16.msra.mxu0 %v1264
        %1360 = vmatpush.bf16.msra.mxu0 %v1262
        %1361 = vmatmul.bf16.gmra.mxu0 %v1125
        %v1362 = vpop.f32.mrf.mxu0
        %v1363 = vadd.f32 %v1162, %v1362
        %v1364 = vpop.f32.mrf.mxu0
        %v1365 = vadd.f32 %v1162, %v1364
        %1366 = vdwg.mxu0
        %1367 = vmatpush.bf16.msra.mxu0 %v1292
        %1368 = vmatpush.bf16.msra.mxu0 %v1290
        %1369 = vmatpush.bf16.msra.mxu0 %v1288
        %1370 = vmatpush.bf16.msra.mxu0 %v1286
        %1371 = vmatpush.bf16.msra.mxu0 %v1284
        %1372 = vmatpush.bf16.msra.mxu0 %v1282
        %1373 = vmatpush.bf16.msra.mxu0 %v1280
        %1374 = vmatpush.bf16.msra.mxu0 %v1278
        %1375 = vmatmul.bf16.gmra.mxu0 %v1126
        %v1376 = vpop.f32.mrf.mxu0
        %v1377 = vadd.f32 %v1363, %v1376
        %v1378 = vpop.f32.mrf.mxu0
        %v1379 = vadd.f32 %v1365, %v1378
        %1380 = vdwg.mxu0
        %v1381 = vxor.u32 %v1349, 2147483648
        %v1382 = vxor.u32 %v1377, 2147483648
        %v1383 = vxor.u32 %v1351, 2147483648
        %v1384 = vxor.u32 %v1379, 2147483648
        %v1385 = vmul.f32 %v1381, 1.442695
        %v1386 = vpow.pop %v1385
        %v1387 = vmul.f32 %v1382, 1.442695
        %v1388 = vpow.pop %v1387
        %v1389 = vmul.f32 %v1383, 1.442695
        %v1390 = vpow.pop %v1389
        %v1391 = vmul.f32 %v1384, 1.442695
        %v1392 = vpow.pop %v1391
        %v1393 = vadd.f32 %v1386, 1.0
        %v1394 = vadd.f32 %v1388, 1.0
        %v1395 = vadd.f32 %v1390, 1.0
        %v1396 = vadd.f32 %v1392, 1.0
        %v1397 = vrcp.pop %v1393
        %v1398 = vmul.f32 %v1393, %v1397
        %v1399 = vsub.f32 1.0, %v1398
        %v1400 = vmul.f32 %v1397, %v1399
        %v1401 = vadd.f32 %v1397, %v1400
        %vm1402 = vweird.f32 %v1393
        %vm1403 = vweird.f32 %v1397
        %vm1404 = vmor %vm1402, %vm1403
        %v1405 = vsel %vm1404, %v1397, %v1401
        %v1406 = vand.u32 2147483647, %v1393
        %vm1407 = vcmp.eq.f32.partialorder %v1406, 8.507059e+37
        %v1408 = vand.u32 %v1393, 2147483648
        %v1409 = vor.u32 1.1754944e-38, %v1408
        %v1410 = vsel %vm1407, %v1409, %v1405
        %v1411 = vmul.f32 1.0, %v1410
        %v1412 = vrcp.pop %v1394
        %v1413 = vmul.f32 %v1394, %v1412
        %v1414 = vsub.f32 1.0, %v1413
        %v1415 = vmul.f32 %v1412, %v1414
        %v1416 = vadd.f32 %v1412, %v1415
        %vm1417 = vweird.f32 %v1394
        %vm1418 = vweird.f32 %v1412
        %vm1419 = vmor %vm1417, %vm1418
        %v1420 = vsel %vm1419, %v1412, %v1416
        %v1421 = vand.u32 2147483647, %v1394
        %vm1422 = vcmp.eq.f32.partialorder %v1421, 8.507059e+37
        %v1423 = vand.u32 %v1394, 2147483648
        %v1424 = vor.u32 1.1754944e-38, %v1423
        %v1425 = vsel %vm1422, %v1424, %v1420
        %v1426 = vmul.f32 1.0, %v1425
        %v1427 = vrcp.pop %v1395
        %v1428 = vmul.f32 %v1395, %v1427
        %v1429 = vsub.f32 1.0, %v1428
        %v1430 = vmul.f32 %v1427, %v1429
        %v1431 = vadd.f32 %v1427, %v1430
        %vm1432 = vweird.f32 %v1395
        %vm1433 = vweird.f32 %v1427
        %vm1434 = vmor %vm1432, %vm1433
        %v1435 = vsel %vm1434, %v1427, %v1431
        %v1436 = vand.u32 2147483647, %v1395
        %vm1437 = vcmp.eq.f32.partialorder %v1436, 8.507059e+37
        %v1438 = vand.u32 %v1395, 2147483648
        %v1439 = vor.u32 1.1754944e-38, %v1438
        %v1440 = vsel %vm1437, %v1439, %v1435
        %v1441 = vmul.f32 1.0, %v1440
        %v1442 = vrcp.pop %v1396
        %v1443 = vmul.f32 %v1396, %v1442
        %v1444 = vsub.f32 1.0, %v1443
        %v1445 = vmul.f32 %v1442, %v1444
        %v1446 = vadd.f32 %v1442, %v1445
        %vm1447 = vweird.f32 %v1396
        %vm1448 = vweird.f32 %v1442
        %vm1449 = vmor %vm1447, %vm1448
        %v1450 = vsel %vm1449, %v1442, %v1446
        %v1451 = vand.u32 2147483647, %v1396
        %vm1452 = vcmp.eq.f32.partialorder %v1451, 8.507059e+37
        %v1453 = vand.u32 %v1396, 2147483648
        %v1454 = vor.u32 1.1754944e-38, %v1453
        %v1455 = vsel %vm1452, %v1454, %v1450
        %v1456 = vmul.f32 1.0, %v1455
        %v1457 = vpack.c.bf16 %v1426, %v1411
        %v1458 = vpack.c.bf16 %v1456, %v1441
        %1459 = vst [vmem:[%s533] sm:$0xff] %v1457
        %1460 = vst [vmem:[%s533 + $0x8] sm:$0xff] %v1458
        %1461 = vst [vmem:[%s540] sm:$0xff] %v967
        %1462 = vst [vmem:[%s540 + $0x8] sm:$0xff] %v969
        %s1463 = sand.u32 %s265, 1
        %s1464 = scalar_lea.sflag [#allocation4], %s1463
        %s1465 = sand.u32 %s265, 1
        %s1466 = smul.addr %s1465, 16
        %s1467 = scalar_lea.vmem [#allocation14], %s1466
        %s1468 = sand.u32 %s291, 1
        %s1469 = scalar_lea.sflag [#allocation16], %s1468
        %s1470 = sand.u32 %s291, 1
        %s1471 = smul.addr %s1470, 16
        %s1472 = scalar_lea.vmem [#allocation15], %s1471
        // Predicated region
        $region89: #{tpu_custom_call.1} parent=59 // pred_check
          %p1473 = pneg %p275
        $region90: #{tpu_custom_call.1} parent=59 // pred_check_branch
          %1475 = sbr.rel (%p1473) target = $region92
        $region91: #{tpu_custom_call.1} parent=59 // pred_region
          %s1476 = smul.u32 2, %s37
          %1478 = vsyncadd %s1464, 0
          %s1479 = smul.addr %s1476, 2
          %s1480 = smul.addr %s1479, 4
          %s1481 = scalar_lea.hbm %s10, %s1480
          %s1482 = sshll.u32 %s1467, 4
          %s1483 = int_to_ptr.vmem [resolvable:$true] %s1482
          %s1484 = sshll.u32 %s1481, 4
          %s1485 = int_to_ptr.hbm [resolvable:$true] %s1484
          %1490 = dma.vmem_to_hbm [thread:$0]  %s1483, 256, %s1485, %s1464, 128, 128, 8
        $region92: #{tpu_custom_call.1} parent=59 // pred_fallthru
          _
        // Predicated region
        $region93: #{tpu_custom_call.1} parent=59 // pred_check
          %p1491 = pneg %p301
        $region94: #{tpu_custom_call.1} parent=59 // pred_check_branch
          %1493 = sbr.rel (%p1491) target = $region96
        $region95: #{tpu_custom_call.1} parent=59 // pred_region
          %s1494 = smul.u32 2, %s37
          %1496 = vsyncadd %s1469, 0
          %s1497 = smul.addr %s1494, 8
          %s1498 = scalar_lea.hbm %s11, %s1497
          %s1499 = sshll.u32 %s1472, 4
          %s1500 = int_to_ptr.vmem [resolvable:$true] %s1499
          %s1501 = sshll.u32 %s1498, 4
          %s1502 = int_to_ptr.hbm [resolvable:$true] %s1501
          %1507 = dma.vmem_to_hbm [thread:$0]  %s1500, 256, %s1502, %s1469, 128, 128, 8
        $region96: #{tpu_custom_call.1} parent=59 // pred_fallthru
          _
      $region60: #{tpu_custom_call.1} parent=5 // pred_fallthru
        _
      %p1508 = scmp.le.s32.totalorder 2, %s32
      // Predicated region
      $region97: #{tpu_custom_call.1} parent=5 // pred_check
        %p1509 = pneg %p1508
      $region98: #{tpu_custom_call.1} parent=5 // pred_check_branch
        %1511 = sbr.rel (%p1509) target = $region100
      $region99: #{tpu_custom_call.1} parent=5 // pred_region
        %s1512 = ssub.s32 %s32, 2
        // Predicated region
        $region101: #{tpu_custom_call.1} parent=99 // pred_check
          %p1513 = pneg %p281
        $region102: #{tpu_custom_call.1} parent=99 // pred_check_branch
          %1515 = sbr.rel (%p1513) target = $region104
        $region103: #{tpu_custom_call.1} parent=99 // pred_region
          %s1516 = sand.u32 %s266, 1
          %s1517 = scalar_lea.sflag [#allocation4], %s1516
          %s1518 = sand.u32 %s266, 1
          %s1519 = smul.addr %s1518, 16
          %s1520 = scalar_lea.vmem [#allocation14], %s1519
          %1522 = dma.done %s1517, 256
        $region104: #{tpu_custom_call.1} parent=99 // pred_fallthru
          _
        // Predicated region
        $region105: #{tpu_custom_call.1} parent=99 // pred_check
          %p1523 = pneg %p307
        $region106: #{tpu_custom_call.1} parent=99 // pred_check_branch
          %1525 = sbr.rel (%p1523) target = $region108
        $region107: #{tpu_custom_call.1} parent=99 // pred_region
          %s1526 = sand.u32 %s292, 1
          %s1527 = scalar_lea.sflag [#allocation16], %s1526
          %s1528 = sand.u32 %s292, 1
          %s1529 = smul.addr %s1528, 16
          %s1530 = scalar_lea.vmem [#allocation15], %s1529
          %1532 = dma.done %s1527, 256
        $region108: #{tpu_custom_call.1} parent=99 // pred_fallthru
          _
      $region100: #{tpu_custom_call.1} parent=5 // pred_fallthru
        _
    $region6: #{tpu_custom_call.1} parent=1 // loop_footer
      %s36 = sadd.s32 1, %s32
    $region7: #{tpu_custom_call.1} parent=1 // loop_footer_branch
      %31 = sbr.rel target = $region3
    $region8: #{tpu_custom_call.1} parent=1 // loop_exit
      _
    %1533 = vsyncpa [#allocation3], 1
    %s1534 = scalar_lea.sflag [#allocation3], 1
    %1535 = vsyncpa %s1534, 1
    %1536 = vsyncpa [#allocation6], 1
    %s1537 = scalar_lea.sflag [#allocation6], 1
    %1538 = vsyncpa %s1537, 1
    %1539 = vsyncpa [#allocation9], 1
    %1540 = vsyncpa [#allocation12], 1
    %1541 = vsyncpa [#allocation4], 1
    %s1542 = scalar_lea.sflag [#allocation4], 1
    %1543 = vsyncpa %s1542, 1
    %1544 = vsyncpa [#allocation16], 1
    %s1545 = scalar_lea.sflag [#allocation16], 1
    %1546 = vsyncpa %s1545, 1

</llo_original>
